<compile_context>
chip_gen: v5e
topology: v5e:2x2
jax: 0.10.0
libtpu: 0.0.40
codegen_flags: <defaults>
</compile_context>

<pallas_src>
import functools

import jax
import jax.numpy as jnp
from jax import lax
from jax.experimental import pallas as pl
from jax.experimental.pallas import tpu as pltpu


def _hint_mult8(v):
    """Alignment hint for dynamic sublane offsets (no-op on Python ints)."""
    if isinstance(v, int):
        return v
    return pl.multiple_of(v, 8)


def _lstm_model_kernel(num_layers, hidden_size, encode_size, seq_len,
                       batch_block, time_chunk,
                       x_ref, enc_w_ref, enc_b_ref, *rest):
    """Whole forward pass for one batch block in a single grid step."""
    H = hidden_size
    E = encode_size
    T = seq_len
    Bb = batch_block              # padded to a multiple of 8 by the wrapper
    CH = time_chunk               # divides T
    CHB = CH * Bb
    NC = T // CH
    W = max(E, H)                 # width of the shared sequence scratch

    layer_refs = rest[:3 * num_layers]            # per layer: w_ih, w_hh, bias
    dec_w_ref, dec_b_ref, out_ref, seq_scr, gx_scr = rest[3 * num_layers:]

    # ----- encoder: Linear + ReLU over ALL timesteps at once, written -----
    # ----- directly into the bf16 sequence scratch (time-major rows). -----
    x_flat = x_ref[...].reshape(T * Bb, x_ref.shape[-1]).astype(jnp.bfloat16)
    enc = jnp.dot(x_flat, enc_w_ref[...], preferred_element_type=jnp.float32)
    enc = jnp.maximum(enc + enc_b_ref[...], 0.0)
    if W == E:
        seq_scr[...] = enc.astype(jnp.bfloat16)
    else:
        seq_scr[:, :E] = enc.astype(jnp.bfloat16)

    unroll = min(CH, 8)
    h = jnp.zeros((Bb, H), jnp.float32)
    cst = jnp.zeros((Bb, H), jnp.float32)

    for l in range(num_layers):
        # Weights loaded once per layer, reused by every timestep (VMEM/vreg
        # resident); i/f/o columns were pre-scaled by 0.5 in the wrapper.
        w_ih = layer_refs[3 * l][...]             # (in_dim, 4H) bf16
        w_hh = layer_refs[3 * l + 1][...]         # (H, 4H)      bf16
        bias = layer_refs[3 * l + 2][...]         # (1, 4H)      f32
        in_dim = E if l == 0 else H
        last_layer = (l == num_layers - 1)

        h = jnp.zeros((Bb, H), jnp.float32)
        cst = jnp.zeros((Bb, H), jnp.float32)

        def chunk_body(c, hc, w_ih=w_ih, w_hh=w_hh, bias=bias,
                       in_dim=in_dim, last_layer=last_layer):
            base = _hint_mult8(c * CHB)
            # x-side gate projection for this chunk: one batched MXU matmul
            # hoisted off the serial recurrence; bias folded in here so the
            # per-step path has no broadcast add.
            xin = seq_scr[pl.ds(base, CHB), :][:, :in_dim]        # bf16
            gx_scr[...] = (
                jnp.dot(xin, w_ih, preferred_element_type=jnp.float32) + bias
            ).astype(jnp.bfloat16)

            def step(t, hc2):
                h2, c2 = hc2                                      # f32 carries
                r = _hint_mult8(t * Bb)
                gates = (jnp.dot(h2.astype(jnp.bfloat16), w_hh,
                                 preferred_element_type=jnp.float32)
                         + gx_scr[pl.ds(r, Bb), :].astype(jnp.float32))
                # i/f/o columns carry a folded 0.5, so one tanh over the full
                # 4H slab gives tanh(x/2); sigmoid(x) = 0.5*tanh(x/2) + 0.5.
                th = jnp.tanh(gates)
                i_g = 0.5 * th[:, 0 * H:1 * H] + 0.5
                f_g = 0.5 * th[:, 1 * H:2 * H] + 0.5
                g_g = th[:, 2 * H:3 * H]
                o_g = 0.5 * th[:, 3 * H:4 * H] + 0.5
                c_new = f_g * c2 + i_g * g_g
                h_new = o_g * jnp.tanh(c_new)
                if not last_layer:                 # feeds the next layer
                    if W == H:
                        seq_scr[pl.ds(base + r, Bb), :] = h_new.astype(jnp.bfloat16)
                    else:
                        seq_scr[pl.ds(base + r, Bb), :H] = h_new.astype(jnp.bfloat16)
                return (h_new, c_new)

            return lax.fori_loop(0, CH, step, hc, unroll=unroll)

        if NC == 1:
            h, cst = chunk_body(0, (h, cst))
        else:
            h, cst = lax.fori_loop(0, NC, chunk_body, (h, cst))

    # ----- decoder on the LAST timestep: VPU reduce (H -> 1) + ReLU -----
    dec = (jnp.sum(h * dec_w_ref[...], axis=-1, keepdims=True) + dec_b_ref[...])
    out_ref[...] = jnp.maximum(dec, 0.0).astype(out_ref.dtype)


def _fold_sigmoid_half(a, H):
    """Scale i/f/o gate columns by 0.5 (PyTorch order i,f,g,o); keep g.

    Lets the kernel evaluate sigmoid via a single tanh over the whole 4H slab:
    sigmoid(x) = 0.5 * tanh(0.5 * x) + 0.5.  Exact for the weights (×0.5)."""
    col = jnp.concatenate([jnp.full((H,), 0.5, a.dtype),
                           jnp.full((H,), 0.5, a.dtype),
                           jnp.ones((H,), a.dtype),
                           jnp.full((H,), 0.5, a.dtype)])
    return a * col


def _round_up(v, m):
    return -(-v // m) * m


def _padded_bytes(shape, dtype):
    """Rough VMEM footprint of one buffer after (sublane, lane) tiling."""
    itemsize = jnp.dtype(dtype).itemsize
    dims = list(shape)
    if not dims:
        return 4 * 128
    dims[-1] = _round_up(dims[-1], 128)
    if len(dims) >= 2:
        dims[-2] = _round_up(dims[-2], 8 * max(1, 4 // itemsize))
    n = 1
    for d in dims:
        n *= d
    return n * itemsize


def _pick_time_chunk(T, target=64):
    if T <= target:
        return T
    for c in range(target, 0, -1):
        if T % c == 0:
            return c
    return T


def lstm_model_forward(x, params, *, num_layers, hidden_size,
                       batch_blocks=None, time_chunk=None):
    """x: (seq_len, batch, input_size) float32.  Returns (batch, 1) float32."""
    seq_len, batch, input_size = x.shape
    H = hidden_size
    E = params["enc_w"].shape[1]
    T = seq_len

    # ---- batch blocking (grid "parallel" axis -> v7x megacore) + padding ----
    if batch_blocks is None:
        # Split across two TensorCores only when each block keeps >= 8 dense
        # sublane rows; tiny batches stay on one block (the recurrence is
        # latency-bound, so splitting them just serializes on 1-TC chips).
        batch_blocks = 2 if (batch % 2 == 0 and batch >= 16) else 1
    Bb = _round_up(-(-batch // batch_blocks), 8)      # per-block rows, mult of 8
    B_pad = Bb * batch_blocks
    if B_pad != batch:
        x = jnp.pad(x, ((0, 0), (0, B_pad - batch), (0, 0)))

    if time_chunk is None:
        time_chunk = _pick_time_chunk(T)
    CH = time_chunk
    W = max(E, H)

    # ---- parameter prep: bf16 MXU weights, 0.5 folded into i/f/o columns ----
    enc_w = params["enc_w"].astype(jnp.bfloat16)                 # (I, E)
    enc_b = params["enc_b"].astype(jnp.float32)                  # (1, E)
    flat_layers = []
    for (w_ih, w_hh, b) in params["layers"]:
        flat_layers += [
            _fold_sigmoid_half(w_ih, H).astype(jnp.bfloat16),    # (in, 4H)
            _fold_sigmoid_half(w_hh, H).astype(jnp.bfloat16),    # (H, 4H)
            _fold_sigmoid_half(b, H).astype(jnp.float32),        # (1, 4H)
        ]
    dec_w = params["dec_w"].reshape(1, H).astype(jnp.float32)    # VPU reduce row
    dec_b = params["dec_b"].astype(jnp.float32)                  # (1, 1)

    inputs = [x, enc_w, enc_b] + flat_layers + [dec_w, dec_b]

    def full_spec(arr):
        return pl.BlockSpec(arr.shape, lambda b, nd=arr.ndim: (0,) * nd)

    in_specs = ([pl.BlockSpec((T, Bb, input_size), lambda b: (0, b, 0))]
                + [full_spec(a) for a in inputs[1:]])
    out_spec = pl.BlockSpec((Bb, 1), lambda b: (b, 0))

    scratch_shapes = [
        pltpu.VMEM((T * Bb, W), jnp.bfloat16),        # layer-in/out sequence
        pltpu.VMEM((CH * Bb, 4 * H), jnp.bfloat16),   # per-chunk x-side gates
    ]

    # ---- explicit VMEM budget (padded estimate; double-buffered blocks) ----
    block_shapes = ([((T, Bb, input_size), jnp.float32)]
                    + [(a.shape, a.dtype) for a in inputs[1:]]
                    + [((Bb, 1), jnp.float32)])
    resident = sum(_padded_bytes(s, d) for s, d in block_shapes)
    scratch_bytes = (_padded_bytes((T * Bb, W), jnp.bfloat16)
                     + _padded_bytes((CH * Bb, 4 * H), jnp.bfloat16))
    vmem_limit = int(min(max(32 << 20, 2 * resident + scratch_bytes + (2 << 20)),
                         120 << 20))

    # ---- advisory cost hint for XLA's scheduler ----
    flops = 2 * T * B_pad * input_size * E
    in_dim = E
    for _ in range(num_layers):
        flops += 2 * T * B_pad * (in_dim + H) * 4 * H
        in_dim = H
    flops += 2 * B_pad * H
    transcendentals = T * num_layers * 5 * B_pad * H
    bytes_accessed = (sum(int(a.size) * a.dtype.itemsize for a in inputs)
                      + B_pad * 4)

    kernel = functools.partial(_lstm_model_kernel, num_layers, H, E, T, Bb, CH)

    out = pl.pallas_call(
        kernel,
        out_shape=jax.ShapeDtypeStruct((B_pad, 1), jnp.float32),
        grid_spec=pltpu.PrefetchScalarGridSpec(
            num_scalar_prefetch=0,
            grid=(batch_blocks,),            # batch blocks -> v7x megacore
            in_specs=in_specs,
            out_specs=out_spec,
            scratch_shapes=scratch_shapes,
        ),
        compiler_params=pltpu.CompilerParams(
            dimension_semantics=("parallel",),
            vmem_limit_bytes=vmem_limit),
        cost_estimate=pl.CostEstimate(
            flops=int(flops),
            transcendentals=int(transcendentals),
            bytes_accessed=int(bytes_accessed)),
    )(*inputs)

    return out[:batch]


def make_params(key, input_size, encode_size, hidden_size, num_layers):
    """Deterministic synthetic parameters, stored pre-transposed for x @ W.

    Weights are in PyTorch layout/gate-order (i, f, g, o); the kernel wrapper
    rescales/casts them."""
    keys = jax.random.split(key, 4 + 4 * num_layers)
    scale = 0.2

    enc_w = scale * jax.random.normal(keys[0], (input_size, encode_size), jnp.float32)
    enc_b = scale * jax.random.normal(keys[1], (1, encode_size), jnp.float32)

    layers = []
    for l in range(num_layers):
        in_dim = encode_size if l == 0 else hidden_size
        k = keys[2 + 4 * l: 2 + 4 * (l + 1)]
        w_ih = scale * jax.random.normal(k[0], (in_dim, 4 * hidden_size), jnp.float32)
        w_hh = scale * jax.random.normal(k[1], (hidden_size, 4 * hidden_size), jnp.float32)
        b_ih = scale * jax.random.normal(k[2], (1, 4 * hidden_size), jnp.float32)
        b_hh = scale * jax.random.normal(k[3], (1, 4 * hidden_size), jnp.float32)
        layers.append((w_ih, w_hh, b_ih + b_hh))  # PyTorch adds both biases

    dec_w = scale * jax.random.normal(keys[2 + 4 * num_layers], (hidden_size, 1), jnp.float32)
    dec_b = scale * jax.random.normal(keys[3 + 4 * num_layers], (1, 1), jnp.float32)

    return {"enc_w": enc_w, "enc_b": enc_b, "layers": layers,
            "dec_w": dec_w, "dec_b": dec_b}


def reference_forward(x, params, *, num_layers, hidden_size):
    """Pure-JAX f32 reference mirroring torch.nn.LSTM semantics."""
    H = hidden_size
    seq_len, batch, _ = x.shape
    seq = jax.nn.relu(x @ params["enc_w"] + params["enc_b"])
    for l in range(num_layers):
        w_ih, w_hh, b = params["layers"][l]
        h = jnp.zeros((batch, H), jnp.float32)
        c = jnp.zeros((batch, H), jnp.float32)
        outs = []
        for t in range(seq_len):
            gates = seq[t] @ w_ih + h @ w_hh + b
            i = jax.nn.sigmoid(gates[:, 0:H])
            f = jax.nn.sigmoid(gates[:, H:2 * H])
            g = jnp.tanh(gates[:, 2 * H:3 * H])
            o = jax.nn.sigmoid(gates[:, 3 * H:4 * H])
            c = f * c + i * g
            h = o * jnp.tanh(c)
            outs.append(h)
        seq = jnp.stack(outs)
    return jax.nn.relu(seq[-1] @ params["dec_w"] + params["dec_b"])


if __name__ == "__main__":
    seq_len, batch = 8, 2
    input_size, encode_size, hidden_size, num_layers = 16, 32, 32, 2

    key = jax.random.PRNGKey(0)
    k_x, k_p = jax.random.split(key)
    x = jax.random.normal(k_x, (seq_len, batch, input_size), jnp.float32)
    params = make_params(k_p, input_size, encode_size, hidden_size, num_layers)

    out = lstm_model_forward(x, params, num_layers=num_layers,
                             hidden_size=hidden_size)
    out = jax.block_until_ready(out)

    ref = reference_forward(x, params, num_layers=num_layers,
                            hidden_size=hidden_size)
    assert out.shape == (batch, 1), out.shape
    # bf16 matmuls / bf16 gx & sequence scratch (f32 accumulation + f32 gate
    # math) -> relaxed tolerance vs the f32 reference
    assert jnp.allclose(out, ref, atol=5e-2, rtol=5e-2), (out, ref)

    print("KERNEL_OK")
</pallas_src>

<mosaic_0001>
module attributes {stable_mosaic.version = 11 : i64} {
  func.func @_lstm_model_kernel(%arg0: i32, %arg1: memref<8x8x16xf32, #tpu.memory_space<vmem>>, %arg2: memref<16x32xbf16, #tpu.memory_space<vmem>>, %arg3: memref<1x32xf32, #tpu.memory_space<vmem>>, %arg4: memref<32x128xbf16, #tpu.memory_space<vmem>>, %arg5: memref<32x128xbf16, #tpu.memory_space<vmem>>, %arg6: memref<1x128xf32, #tpu.memory_space<vmem>>, %arg7: memref<32x128xbf16, #tpu.memory_space<vmem>>, %arg8: memref<32x128xbf16, #tpu.memory_space<vmem>>, %arg9: memref<1x128xf32, #tpu.memory_space<vmem>>, %arg10: memref<1x32xf32, #tpu.memory_space<vmem>>, %arg11: memref<1x1xf32, #tpu.memory_space<vmem>>, %arg12: memref<8x1xf32, #tpu.memory_space<vmem>>, %arg13: memref<64x32xbf16, #tpu.memory_space<vmem>>, %arg14: memref<64x128xbf16, #tpu.memory_space<vmem>>) attributes {dimension_semantics = [#tpu.dimension_semantics<parallel>], iteration_bounds = array<i64: 1>, scalar_prefetch = 0 : i64, scratch_operands = 2 : i64, tpu.core_type = #tpu.core_type<tc>, window_params = [{transform_indices = @transform_0, window_bounds = array<i64: 8, 8, 16>}, {pipeline_mode = #tpu.pipeline_mode<synchronous>, transform_indices = @transform_1, window_bounds = array<i64: 16, 32>}, {pipeline_mode = #tpu.pipeline_mode<synchronous>, transform_indices = @transform_2, window_bounds = array<i64: 1, 32>}, {pipeline_mode = #tpu.pipeline_mode<synchronous>, transform_indices = @transform_3, window_bounds = array<i64: 32, 128>}, {pipeline_mode = #tpu.pipeline_mode<synchronous>, transform_indices = @transform_4, window_bounds = array<i64: 32, 128>}, {pipeline_mode = #tpu.pipeline_mode<synchronous>, transform_indices = @transform_5, window_bounds = array<i64: 1, 128>}, {pipeline_mode = #tpu.pipeline_mode<synchronous>, transform_indices = @transform_6, window_bounds = array<i64: 32, 128>}, {pipeline_mode = #tpu.pipeline_mode<synchronous>, transform_indices = @transform_7, window_bounds = array<i64: 32, 128>}, {pipeline_mode = #tpu.pipeline_mode<synchronous>, transform_indices = @transform_8, window_bounds = array<i64: 1, 128>}, {pipeline_mode = #tpu.pipeline_mode<synchronous>, transform_indices = @transform_9, window_bounds = array<i64: 1, 32>}, {pipeline_mode = #tpu.pipeline_mode<synchronous>, transform_indices = @transform_10, window_bounds = array<i64: 1, 1>}, {transform_indices = @transform_11, window_bounds = array<i64: 8, 1>}]} {
    %c0 = arith.constant 0 : index
    %c0_0 = arith.constant 0 : index
    %c0_1 = arith.constant 0 : index
    %0 = vector.load %arg1[%c0, %c0_0, %c0_1] : memref<8x8x16xf32, #tpu.memory_space<vmem>>, vector<8x8x16xf32>
    %1 = vector.shape_cast %0 : vector<8x8x16xf32> to vector<64x16xf32>
    %2 = arith.truncf %1 : vector<64x16xf32> to vector<64x16xbf16>
    %c0_2 = arith.constant 0 : index
    %c0_3 = arith.constant 0 : index
    %3 = vector.load %arg2[%c0_2, %c0_3] : memref<16x32xbf16, #tpu.memory_space<vmem>>, vector<16x32xbf16>
    %cst = arith.constant dense<0.000000e+00> : vector<64x32xf32>
    %4 = tpu.matmul %2, %3, %cst {dimension_numbers = #tpu.dot_dimension_numbers<[1], [0], [0], [1], [0, 0, 1, 1], [], []>} : vector<64x16xbf16>, vector<16x32xbf16>, vector<64x32xf32> -> vector<64x32xf32>
    %c0_4 = arith.constant 0 : index
    %c0_5 = arith.constant 0 : index
    %5 = vector.load %arg3[%c0_4, %c0_5] : memref<1x32xf32, #tpu.memory_space<vmem>>, vector<1x32xf32>
    %6 = vector.broadcast %5 : vector<1x32xf32> to vector<64x32xf32>
    %7 = arith.addf %4, %6 : vector<64x32xf32>
    %cst_6 = arith.constant 0.000000e+00 : f32
    %8 = vector.broadcast %cst_6 : f32 to vector<64x32xf32>
    %9 = arith.maximumf %7, %8 : vector<64x32xf32>
    %10 = arith.truncf %9 : vector<64x32xf32> to vector<64x32xbf16>
    %c0_7 = arith.constant 0 : index
    %c0_8 = arith.constant 0 : index
    %11 = vector.load %arg13[%c0_7, %c0_8] : memref<64x32xbf16, #tpu.memory_space<vmem>>, vector<64x32xbf16>
    tpu.vector_store %arg13[%c0_7, %c0_8], %10 {strides = array<i32>} : memref<64x32xbf16, #tpu.memory_space<vmem>>, vector<64x32xbf16>,
    %c0_9 = arith.constant 0 : index
    %c0_10 = arith.constant 0 : index
    %12 = vector.load %arg4[%c0_9, %c0_10] : memref<32x128xbf16, #tpu.memory_space<vmem>>, vector<32x128xbf16>
    %c0_11 = arith.constant 0 : index
    %c0_12 = arith.constant 0 : index
    %13 = vector.load %arg5[%c0_11, %c0_12] : memref<32x128xbf16, #tpu.memory_space<vmem>>, vector<32x128xbf16>
    %c0_13 = arith.constant 0 : index
    %c0_14 = arith.constant 0 : index
    %14 = vector.load %arg6[%c0_13, %c0_14] : memref<1x128xf32, #tpu.memory_space<vmem>>, vector<1x128xf32>
    %cst_15 = arith.constant 0.000000e+00 : f32
    %15 = vector.broadcast %cst_15 : f32 to vector<8x32xf32>
    %cst_16 = arith.constant 0.000000e+00 : f32
    %16 = vector.broadcast %cst_16 : f32 to vector<8x32xf32>
    %c0_17 = arith.constant 0 : index
    %c0_18 = arith.constant 0 : index
    %17 = vector.load %arg13[%c0_17, %c0_18] : memref<64x32xbf16, #tpu.memory_space<vmem>>, vector<64x32xbf16>
    %cst_19 = arith.constant dense<0.000000e+00> : vector<64x128xf32>
    %18 = tpu.matmul %17, %12, %cst_19 {dimension_numbers = #tpu.dot_dimension_numbers<[1], [0], [0], [1], [0, 0, 1, 1], [], []>} : vector<64x32xbf16>, vector<32x128xbf16>, vector<64x128xf32> -> vector<64x128xf32>
    %19 = vector.broadcast %14 : vector<1x128xf32> to vector<64x128xf32>
    %20 = arith.addf %18, %19 : vector<64x128xf32>
    %21 = arith.truncf %20 : vector<64x128xf32> to vector<64x128xbf16>
    %c0_20 = arith.constant 0 : index
    %c0_21 = arith.constant 0 : index
    %22 = vector.load %arg14[%c0_20, %c0_21] : memref<64x128xbf16, #tpu.memory_space<vmem>>, vector<64x128xbf16>
    tpu.vector_store %arg14[%c0_20, %c0_21], %21 {strides = array<i32>} : memref<64x128xbf16, #tpu.memory_space<vmem>>, vector<64x128xbf16>,
    %c0_i32 = arith.constant 0 : i32
    %c8_i32 = arith.constant 8 : i32
    %23 = arith.muli %c0_i32, %c8_i32 : i32
    %24 = tpu.assume_multiple %23, 8 : i32
    %25 = arith.truncf %15 : vector<8x32xf32> to vector<8x32xbf16>
    %cst_22 = arith.constant dense<0.000000e+00> : vector<8x128xf32>
    %26 = tpu.matmul %25, %13, %cst_22 {dimension_numbers = #tpu.dot_dimension_numbers<[1], [0], [0], [1], [0, 0, 1, 1], [], []>} : vector<8x32xbf16>, vector<32x128xbf16>, vector<8x128xf32> -> vector<8x128xf32>
    %27 = arith.index_cast %24 : i32 to index
    %c0_23 = arith.constant 0 : index
    %28 = vector.load %arg14[%27, %c0_23] : memref<64x128xbf16, #tpu.memory_space<vmem>>, vector<8x128xbf16>
    %29 = arith.extf %28 : vector<8x128xbf16> to vector<8x128xf32>
    %30 = arith.addf %26, %29 : vector<8x128xf32>
    %31 = math.tanh %30 : vector<8x128xf32>
    %32 = vector.extract_strided_slice %31 {offsets = [0, 0], sizes = [8, 32], strides = [1, 1]} : vector<8x128xf32> to vector<8x32xf32>
    %cst_24 = arith.constant 5.000000e-01 : f32
    %33 = vector.broadcast %cst_24 : f32 to vector<8x32xf32>
    %34 = arith.mulf %33, %32 : vector<8x32xf32>
    %cst_25 = arith.constant 5.000000e-01 : f32
    %35 = vector.broadcast %cst_25 : f32 to vector<8x32xf32>
    %36 = arith.addf %34, %35 : vector<8x32xf32>
    %37 = vector.extract_strided_slice %31 {offsets = [0, 32], sizes = [8, 32], strides = [1, 1]} : vector<8x128xf32> to vector<8x32xf32>
    %cst_26 = arith.constant 5.000000e-01 : f32
    %38 = vector.broadcast %cst_26 : f32 to vector<8x32xf32>
    %39 = arith.mulf %38, %37 : vector<8x32xf32>
    %cst_27 = arith.constant 5.000000e-01 : f32
    %40 = vector.broadcast %cst_27 : f32 to vector<8x32xf32>
    %41 = arith.addf %39, %40 : vector<8x32xf32>
    %42 = vector.extract_strided_slice %31 {offsets = [0, 64], sizes = [8, 32], strides = [1, 1]} : vector<8x128xf32> to vector<8x32xf32>
    %43 = vector.extract_strided_slice %31 {offsets = [0, 96], sizes = [8, 32], strides = [1, 1]} : vector<8x128xf32> to vector<8x32xf32>
    %cst_28 = arith.constant 5.000000e-01 : f32
    %44 = vector.broadcast %cst_28 : f32 to vector<8x32xf32>
    %45 = arith.mulf %44, %43 : vector<8x32xf32>
    %cst_29 = arith.constant 5.000000e-01 : f32
    %46 = vector.broadcast %cst_29 : f32 to vector<8x32xf32>
    %47 = arith.addf %45, %46 : vector<8x32xf32>
    %48 = arith.mulf %41, %16 : vector<8x32xf32>
    %49 = arith.mulf %36, %42 : vector<8x32xf32>
    %50 = arith.addf %48, %49 : vector<8x32xf32>
    %51 = math.tanh %50 : vector<8x32xf32>
    %52 = arith.mulf %47, %51 : vector<8x32xf32>
    %53 = arith.truncf %52 : vector<8x32xf32> to vector<8x32xbf16>
    %c0_i32_30 = arith.constant 0 : i32
    %54 = arith.addi %c0_i32_30, %24 : i32
    %55 = arith.index_cast %54 : i32 to index
    %c0_31 = arith.constant 0 : index
    %56 = vector.load %arg13[%55, %c0_31] : memref<64x32xbf16, #tpu.memory_space<vmem>>, vector<8x32xbf16>
    tpu.vector_store %arg13[%55, %c0_31], %53 {strides = array<i32>} : memref<64x32xbf16, #tpu.memory_space<vmem>>, vector<8x32xbf16>,
    %c1_i32 = arith.constant 1 : i32
    %c8_i32_32 = arith.constant 8 : i32
    %57 = arith.muli %c1_i32, %c8_i32_32 : i32
    %58 = tpu.assume_multiple %57, 8 : i32
    %59 = arith.truncf %52 : vector<8x32xf32> to vector<8x32xbf16>
    %cst_33 = arith.constant dense<0.000000e+00> : vector<8x128xf32>
    %60 = tpu.matmul %59, %13, %cst_33 {dimension_numbers = #tpu.dot_dimension_numbers<[1], [0], [0], [1], [0, 0, 1, 1], [], []>} : vector<8x32xbf16>, vector<32x128xbf16>, vector<8x128xf32> -> vector<8x128xf32>
    %61 = arith.index_cast %58 : i32 to index
    %c0_34 = arith.constant 0 : index
    %62 = vector.load %arg14[%61, %c0_34] : memref<64x128xbf16, #tpu.memory_space<vmem>>, vector<8x128xbf16>
    %63 = arith.extf %62 : vector<8x128xbf16> to vector<8x128xf32>
    %64 = arith.addf %60, %63 : vector<8x128xf32>
    %65 = math.tanh %64 : vector<8x128xf32>
    %66 = vector.extract_strided_slice %65 {offsets = [0, 0], sizes = [8, 32], strides = [1, 1]} : vector<8x128xf32> to vector<8x32xf32>
    %cst_35 = arith.constant 5.000000e-01 : f32
    %67 = vector.broadcast %cst_35 : f32 to vector<8x32xf32>
    %68 = arith.mulf %67, %66 : vector<8x32xf32>
    %cst_36 = arith.constant 5.000000e-01 : f32
    %69 = vector.broadcast %cst_36 : f32 to vector<8x32xf32>
    %70 = arith.addf %68, %69 : vector<8x32xf32>
    %71 = vector.extract_strided_slice %65 {offsets = [0, 32], sizes = [8, 32], strides = [1, 1]} : vector<8x128xf32> to vector<8x32xf32>
    %cst_37 = arith.constant 5.000000e-01 : f32
    %72 = vector.broadcast %cst_37 : f32 to vector<8x32xf32>
    %73 = arith.mulf %72, %71 : vector<8x32xf32>
    %cst_38 = arith.constant 5.000000e-01 : f32
    %74 = vector.broadcast %cst_38 : f32 to vector<8x32xf32>
    %75 = arith.addf %73, %74 : vector<8x32xf32>
    %76 = vector.extract_strided_slice %65 {offsets = [0, 64], sizes = [8, 32], strides = [1, 1]} : vector<8x128xf32> to vector<8x32xf32>
    %77 = vector.extract_strided_slice %65 {offsets = [0, 96], sizes = [8, 32], strides = [1, 1]} : vector<8x128xf32> to vector<8x32xf32>
    %cst_39 = arith.constant 5.000000e-01 : f32
    %78 = vector.broadcast %cst_39 : f32 to vector<8x32xf32>
    %79 = arith.mulf %78, %77 : vector<8x32xf32>
    %cst_40 = arith.constant 5.000000e-01 : f32
    %80 = vector.broadcast %cst_40 : f32 to vector<8x32xf32>
    %81 = arith.addf %79, %80 : vector<8x32xf32>
    %82 = arith.mulf %75, %50 : vector<8x32xf32>
    %83 = arith.mulf %70, %76 : vector<8x32xf32>
    %84 = arith.addf %82, %83 : vector<8x32xf32>
    %85 = math.tanh %84 : vector<8x32xf32>
    %86 = arith.mulf %81, %85 : vector<8x32xf32>
    %87 = arith.truncf %86 : vector<8x32xf32> to vector<8x32xbf16>
    %c0_i32_41 = arith.constant 0 : i32
    %88 = arith.addi %c0_i32_41, %58 : i32
    %89 = arith.index_cast %88 : i32 to index
    %c0_42 = arith.constant 0 : index
    %90 = vector.load %arg13[%89, %c0_42] : memref<64x32xbf16, #tpu.memory_space<vmem>>, vector<8x32xbf16>
    tpu.vector_store %arg13[%89, %c0_42], %87 {strides = array<i32>} : memref<64x32xbf16, #tpu.memory_space<vmem>>, vector<8x32xbf16>,
    %c2_i32 = arith.constant 2 : i32
    %c8_i32_43 = arith.constant 8 : i32
    %91 = arith.muli %c2_i32, %c8_i32_43 : i32
    %92 = tpu.assume_multiple %91, 8 : i32
    %93 = arith.truncf %86 : vector<8x32xf32> to vector<8x32xbf16>
    %cst_44 = arith.constant dense<0.000000e+00> : vector<8x128xf32>
    %94 = tpu.matmul %93, %13, %cst_44 {dimension_numbers = #tpu.dot_dimension_numbers<[1], [0], [0], [1], [0, 0, 1, 1], [], []>} : vector<8x32xbf16>, vector<32x128xbf16>, vector<8x128xf32> -> vector<8x128xf32>
    %95 = arith.index_cast %92 : i32 to index
    %c0_45 = arith.constant 0 : index
    %96 = vector.load %arg14[%95, %c0_45] : memref<64x128xbf16, #tpu.memory_space<vmem>>, vector<8x128xbf16>
    %97 = arith.extf %96 : vector<8x128xbf16> to vector<8x128xf32>
    %98 = arith.addf %94, %97 : vector<8x128xf32>
    %99 = math.tanh %98 : vector<8x128xf32>
    %100 = vector.extract_strided_slice %99 {offsets = [0, 0], sizes = [8, 32], strides = [1, 1]} : vector<8x128xf32> to vector<8x32xf32>
    %cst_46 = arith.constant 5.000000e-01 : f32
    %101 = vector.broadcast %cst_46 : f32 to vector<8x32xf32>
    %102 = arith.mulf %101, %100 : vector<8x32xf32>
    %cst_47 = arith.constant 5.000000e-01 : f32
    %103 = vector.broadcast %cst_47 : f32 to vector<8x32xf32>
    %104 = arith.addf %102, %103 : vector<8x32xf32>
    %105 = vector.extract_strided_slice %99 {offsets = [0, 32], sizes = [8, 32], strides = [1, 1]} : vector<8x128xf32> to vector<8x32xf32>
    %cst_48 = arith.constant 5.000000e-01 : f32
    %106 = vector.broadcast %cst_48 : f32 to vector<8x32xf32>
    %107 = arith.mulf %106, %105 : vector<8x32xf32>
    %cst_49 = arith.constant 5.000000e-01 : f32
    %108 = vector.broadcast %cst_49 : f32 to vector<8x32xf32>
    %109 = arith.addf %107, %108 : vector<8x32xf32>
    %110 = vector.extract_strided_slice %99 {offsets = [0, 64], sizes = [8, 32], strides = [1, 1]} : vector<8x128xf32> to vector<8x32xf32>
    %111 = vector.extract_strided_slice %99 {offsets = [0, 96], sizes = [8, 32], strides = [1, 1]} : vector<8x128xf32> to vector<8x32xf32>
    %cst_50 = arith.constant 5.000000e-01 : f32
    %112 = vector.broadcast %cst_50 : f32 to vector<8x32xf32>
    %113 = arith.mulf %112, %111 : vector<8x32xf32>
    %cst_51 = arith.constant 5.000000e-01 : f32
    %114 = vector.broadcast %cst_51 : f32 to vector<8x32xf32>
    %115 = arith.addf %113, %114 : vector<8x32xf32>
    %116 = arith.mulf %109, %84 : vector<8x32xf32>
    %117 = arith.mulf %104, %110 : vector<8x32xf32>
    %118 = arith.addf %116, %117 : vector<8x32xf32>
    %119 = math.tanh %118 : vector<8x32xf32>
    %120 = arith.mulf %115, %119 : vector<8x32xf32>
    %121 = arith.truncf %120 : vector<8x32xf32> to vector<8x32xbf16>
    %c0_i32_52 = arith.constant 0 : i32
    %122 = arith.addi %c0_i32_52, %92 : i32
    %123 = arith.index_cast %122 : i32 to index
    %c0_53 = arith.constant 0 : index
    %124 = vector.load %arg13[%123, %c0_53] : memref<64x32xbf16, #tpu.memory_space<vmem>>, vector<8x32xbf16>
    tpu.vector_store %arg13[%123, %c0_53], %121 {strides = array<i32>} : memref<64x32xbf16, #tpu.memory_space<vmem>>, vector<8x32xbf16>,
    %c3_i32 = arith.constant 3 : i32
    %c8_i32_54 = arith.constant 8 : i32
    %125 = arith.muli %c3_i32, %c8_i32_54 : i32
    %126 = tpu.assume_multiple %125, 8 : i32
    %127 = arith.truncf %120 : vector<8x32xf32> to vector<8x32xbf16>
    %cst_55 = arith.constant dense<0.000000e+00> : vector<8x128xf32>
    %128 = tpu.matmul %127, %13, %cst_55 {dimension_numbers = #tpu.dot_dimension_numbers<[1], [0], [0], [1], [0, 0, 1, 1], [], []>} : vector<8x32xbf16>, vector<32x128xbf16>, vector<8x128xf32> -> vector<8x128xf32>
    %129 = arith.index_cast %126 : i32 to index
    %c0_56 = arith.constant 0 : index
    %130 = vector.load %arg14[%129, %c0_56] : memref<64x128xbf16, #tpu.memory_space<vmem>>, vector<8x128xbf16>
    %131 = arith.extf %130 : vector<8x128xbf16> to vector<8x128xf32>
    %132 = arith.addf %128, %131 : vector<8x128xf32>
    %133 = math.tanh %132 : vector<8x128xf32>
    %134 = vector.extract_strided_slice %133 {offsets = [0, 0], sizes = [8, 32], strides = [1, 1]} : vector<8x128xf32> to vector<8x32xf32>
    %cst_57 = arith.constant 5.000000e-01 : f32
    %135 = vector.broadcast %cst_57 : f32 to vector<8x32xf32>
    %136 = arith.mulf %135, %134 : vector<8x32xf32>
    %cst_58 = arith.constant 5.000000e-01 : f32
    %137 = vector.broadcast %cst_58 : f32 to vector<8x32xf32>
    %138 = arith.addf %136, %137 : vector<8x32xf32>
    %139 = vector.extract_strided_slice %133 {offsets = [0, 32], sizes = [8, 32], strides = [1, 1]} : vector<8x128xf32> to vector<8x32xf32>
    %cst_59 = arith.constant 5.000000e-01 : f32
    %140 = vector.broadcast %cst_59 : f32 to vector<8x32xf32>
    %141 = arith.mulf %140, %139 : vector<8x32xf32>
    %cst_60 = arith.constant 5.000000e-01 : f32
    %142 = vector.broadcast %cst_60 : f32 to vector<8x32xf32>
    %143 = arith.addf %141, %142 : vector<8x32xf32>
    %144 = vector.extract_strided_slice %133 {offsets = [0, 64], sizes = [8, 32], strides = [1, 1]} : vector<8x128xf32> to vector<8x32xf32>
    %145 = vector.extract_strided_slice %133 {offsets = [0, 96], sizes = [8, 32], strides = [1, 1]} : vector<8x128xf32> to vector<8x32xf32>
    %cst_61 = arith.constant 5.000000e-01 : f32
    %146 = vector.broadcast %cst_61 : f32 to vector<8x32xf32>
    %147 = arith.mulf %146, %145 : vector<8x32xf32>
    %cst_62 = arith.constant 5.000000e-01 : f32
    %148 = vector.broadcast %cst_62 : f32 to vector<8x32xf32>
    %149 = arith.addf %147, %148 : vector<8x32xf32>
    %150 = arith.mulf %143, %118 : vector<8x32xf32>
    %151 = arith.mulf %138, %144 : vector<8x32xf32>
    %152 = arith.addf %150, %151 : vector<8x32xf32>
    %153 = math.tanh %152 : vector<8x32xf32>
    %154 = arith.mulf %149, %153 : vector<8x32xf32>
    %155 = arith.truncf %154 : vector<8x32xf32> to vector<8x32xbf16>
    %c0_i32_63 = arith.constant 0 : i32
    %156 = arith.addi %c0_i32_63, %126 : i32
    %157 = arith.index_cast %156 : i32 to index
    %c0_64 = arith.constant 0 : index
    %158 = vector.load %arg13[%157, %c0_64] : memref<64x32xbf16, #tpu.memory_space<vmem>>, vector<8x32xbf16>
    tpu.vector_store %arg13[%157, %c0_64], %155 {strides = array<i32>} : memref<64x32xbf16, #tpu.memory_space<vmem>>, vector<8x32xbf16>,
    %c4_i32 = arith.constant 4 : i32
    %c8_i32_65 = arith.constant 8 : i32
    %159 = arith.muli %c4_i32, %c8_i32_65 : i32
    %160 = tpu.assume_multiple %159, 8 : i32
    %161 = arith.truncf %154 : vector<8x32xf32> to vector<8x32xbf16>
    %cst_66 = arith.constant dense<0.000000e+00> : vector<8x128xf32>
    %162 = tpu.matmul %161, %13, %cst_66 {dimension_numbers = #tpu.dot_dimension_numbers<[1], [0], [0], [1], [0, 0, 1, 1], [], []>} : vector<8x32xbf16>, vector<32x128xbf16>, vector<8x128xf32> -> vector<8x128xf32>
    %163 = arith.index_cast %160 : i32 to index
    %c0_67 = arith.constant 0 : index
    %164 = vector.load %arg14[%163, %c0_67] : memref<64x128xbf16, #tpu.memory_space<vmem>>, vector<8x128xbf16>
    %165 = arith.extf %164 : vector<8x128xbf16> to vector<8x128xf32>
    %166 = arith.addf %162, %165 : vector<8x128xf32>
    %167 = math.tanh %166 : vector<8x128xf32>
    %168 = vector.extract_strided_slice %167 {offsets = [0, 0], sizes = [8, 32], strides = [1, 1]} : vector<8x128xf32> to vector<8x32xf32>
    %cst_68 = arith.constant 5.000000e-01 : f32
    %169 = vector.broadcast %cst_68 : f32 to vector<8x32xf32>
    %170 = arith.mulf %169, %168 : vector<8x32xf32>
    %cst_69 = arith.constant 5.000000e-01 : f32
    %171 = vector.broadcast %cst_69 : f32 to vector<8x32xf32>
    %172 = arith.addf %170, %171 : vector<8x32xf32>
    %173 = vector.extract_strided_slice %167 {offsets = [0, 32], sizes = [8, 32], strides = [1, 1]} : vector<8x128xf32> to vector<8x32xf32>
    %cst_70 = arith.constant 5.000000e-01 : f32
    %174 = vector.broadcast %cst_70 : f32 to vector<8x32xf32>
    %175 = arith.mulf %174, %173 : vector<8x32xf32>
    %cst_71 = arith.constant 5.000000e-01 : f32
    %176 = vector.broadcast %cst_71 : f32 to vector<8x32xf32>
    %177 = arith.addf %175, %176 : vector<8x32xf32>
    %178 = vector.extract_strided_slice %167 {offsets = [0, 64], sizes = [8, 32], strides = [1, 1]} : vector<8x128xf32> to vector<8x32xf32>
    %179 = vector.extract_strided_slice %167 {offsets = [0, 96], sizes = [8, 32], strides = [1, 1]} : vector<8x128xf32> to vector<8x32xf32>
    %cst_72 = arith.constant 5.000000e-01 : f32
    %180 = vector.broadcast %cst_72 : f32 to vector<8x32xf32>
    %181 = arith.mulf %180, %179 : vector<8x32xf32>
    %cst_73 = arith.constant 5.000000e-01 : f32
    %182 = vector.broadcast %cst_73 : f32 to vector<8x32xf32>
    %183 = arith.addf %181, %182 : vector<8x32xf32>
    %184 = arith.mulf %177, %152 : vector<8x32xf32>
    %185 = arith.mulf %172, %178 : vector<8x32xf32>
    %186 = arith.addf %184, %185 : vector<8x32xf32>
    %187 = math.tanh %186 : vector<8x32xf32>
    %188 = arith.mulf %183, %187 : vector<8x32xf32>
    %189 = arith.truncf %188 : vector<8x32xf32> to vector<8x32xbf16>
    %c0_i32_74 = arith.constant 0 : i32
    %190 = arith.addi %c0_i32_74, %160 : i32
    %191 = arith.index_cast %190 : i32 to index
    %c0_75 = arith.constant 0 : index
    %192 = vector.load %arg13[%191, %c0_75] : memref<64x32xbf16, #tpu.memory_space<vmem>>, vector<8x32xbf16>
    tpu.vector_store %arg13[%191, %c0_75], %189 {strides = array<i32>} : memref<64x32xbf16, #tpu.memory_space<vmem>>, vector<8x32xbf16>,
    %c5_i32 = arith.constant 5 : i32
    %c8_i32_76 = arith.constant 8 : i32
    %193 = arith.muli %c5_i32, %c8_i32_76 : i32
    %194 = tpu.assume_multiple %193, 8 : i32
    %195 = arith.truncf %188 : vector<8x32xf32> to vector<8x32xbf16>
    %cst_77 = arith.constant dense<0.000000e+00> : vector<8x128xf32>
    %196 = tpu.matmul %195, %13, %cst_77 {dimension_numbers = #tpu.dot_dimension_numbers<[1], [0], [0], [1], [0, 0, 1, 1], [], []>} : vector<8x32xbf16>, vector<32x128xbf16>, vector<8x128xf32> -> vector<8x128xf32>
    %197 = arith.index_cast %194 : i32 to index
    %c0_78 = arith.constant 0 : index
    %198 = vector.load %arg14[%197, %c0_78] : memref<64x128xbf16, #tpu.memory_space<vmem>>, vector<8x128xbf16>
    %199 = arith.extf %198 : vector<8x128xbf16> to vector<8x128xf32>
    %200 = arith.addf %196, %199 : vector<8x128xf32>
    %201 = math.tanh %200 : vector<8x128xf32>
    %202 = vector.extract_strided_slice %201 {offsets = [0, 0], sizes = [8, 32], strides = [1, 1]} : vector<8x128xf32> to vector<8x32xf32>
    %cst_79 = arith.constant 5.000000e-01 : f32
    %203 = vector.broadcast %cst_79 : f32 to vector<8x32xf32>
    %204 = arith.mulf %203, %202 : vector<8x32xf32>
    %cst_80 = arith.constant 5.000000e-01 : f32
    %205 = vector.broadcast %cst_80 : f32 to vector<8x32xf32>
    %206 = arith.addf %204, %205 : vector<8x32xf32>
    %207 = vector.extract_strided_slice %201 {offsets = [0, 32], sizes = [8, 32], strides = [1, 1]} : vector<8x128xf32> to vector<8x32xf32>
    %cst_81 = arith.constant 5.000000e-01 : f32
    %208 = vector.broadcast %cst_81 : f32 to vector<8x32xf32>
    %209 = arith.mulf %208, %207 : vector<8x32xf32>
    %cst_82 = arith.constant 5.000000e-01 : f32
    %210 = vector.broadcast %cst_82 : f32 to vector<8x32xf32>
    %211 = arith.addf %209, %210 : vector<8x32xf32>
    %212 = vector.extract_strided_slice %201 {offsets = [0, 64], sizes = [8, 32], strides = [1, 1]} : vector<8x128xf32> to vector<8x32xf32>
    %213 = vector.extract_strided_slice %201 {offsets = [0, 96], sizes = [8, 32], strides = [1, 1]} : vector<8x128xf32> to vector<8x32xf32>
    %cst_83 = arith.constant 5.000000e-01 : f32
    %214 = vector.broadcast %cst_83 : f32 to vector<8x32xf32>
    %215 = arith.mulf %214, %213 : vector<8x32xf32>
    %cst_84 = arith.constant 5.000000e-01 : f32
    %216 = vector.broadcast %cst_84 : f32 to vector<8x32xf32>
    %217 = arith.addf %215, %216 : vector<8x32xf32>
    %218 = arith.mulf %211, %186 : vector<8x32xf32>
    %219 = arith.mulf %206, %212 : vector<8x32xf32>
    %220 = arith.addf %218, %219 : vector<8x32xf32>
    %221 = math.tanh %220 : vector<8x32xf32>
    %222 = arith.mulf %217, %221 : vector<8x32xf32>
    %223 = arith.truncf %222 : vector<8x32xf32> to vector<8x32xbf16>
    %c0_i32_85 = arith.constant 0 : i32
    %224 = arith.addi %c0_i32_85, %194 : i32
    %225 = arith.index_cast %224 : i32 to index
    %c0_86 = arith.constant 0 : index
    %226 = vector.load %arg13[%225, %c0_86] : memref<64x32xbf16, #tpu.memory_space<vmem>>, vector<8x32xbf16>
    tpu.vector_store %arg13[%225, %c0_86], %223 {strides = array<i32>} : memref<64x32xbf16, #tpu.memory_space<vmem>>, vector<8x32xbf16>,
    %c6_i32 = arith.constant 6 : i32
    %c8_i32_87 = arith.constant 8 : i32
    %227 = arith.muli %c6_i32, %c8_i32_87 : i32
    %228 = tpu.assume_multiple %227, 8 : i32
    %229 = arith.truncf %222 : vector<8x32xf32> to vector<8x32xbf16>
    %cst_88 = arith.constant dense<0.000000e+00> : vector<8x128xf32>
    %230 = tpu.matmul %229, %13, %cst_88 {dimension_numbers = #tpu.dot_dimension_numbers<[1], [0], [0], [1], [0, 0, 1, 1], [], []>} : vector<8x32xbf16>, vector<32x128xbf16>, vector<8x128xf32> -> vector<8x128xf32>
    %231 = arith.index_cast %228 : i32 to index
    %c0_89 = arith.constant 0 : index
    %232 = vector.load %arg14[%231, %c0_89] : memref<64x128xbf16, #tpu.memory_space<vmem>>, vector<8x128xbf16>
    %233 = arith.extf %232 : vector<8x128xbf16> to vector<8x128xf32>
    %234 = arith.addf %230, %233 : vector<8x128xf32>
    %235 = math.tanh %234 : vector<8x128xf32>
    %236 = vector.extract_strided_slice %235 {offsets = [0, 0], sizes = [8, 32], strides = [1, 1]} : vector<8x128xf32> to vector<8x32xf32>
    %cst_90 = arith.constant 5.000000e-01 : f32
    %237 = vector.broadcast %cst_90 : f32 to vector<8x32xf32>
    %238 = arith.mulf %237, %236 : vector<8x32xf32>
    %cst_91 = arith.constant 5.000000e-01 : f32
    %239 = vector.broadcast %cst_91 : f32 to vector<8x32xf32>
    %240 = arith.addf %238, %239 : vector<8x32xf32>
    %241 = vector.extract_strided_slice %235 {offsets = [0, 32], sizes = [8, 32], strides = [1, 1]} : vector<8x128xf32> to vector<8x32xf32>
    %cst_92 = arith.constant 5.000000e-01 : f32
    %242 = vector.broadcast %cst_92 : f32 to vector<8x32xf32>
    %243 = arith.mulf %242, %241 : vector<8x32xf32>
    %cst_93 = arith.constant 5.000000e-01 : f32
    %244 = vector.broadcast %cst_93 : f32 to vector<8x32xf32>
    %245 = arith.addf %243, %244 : vector<8x32xf32>
    %246 = vector.extract_strided_slice %235 {offsets = [0, 64], sizes = [8, 32], strides = [1, 1]} : vector<8x128xf32> to vector<8x32xf32>
    %247 = vector.extract_strided_slice %235 {offsets = [0, 96], sizes = [8, 32], strides = [1, 1]} : vector<8x128xf32> to vector<8x32xf32>
    %cst_94 = arith.constant 5.000000e-01 : f32
    %248 = vector.broadcast %cst_94 : f32 to vector<8x32xf32>
    %249 = arith.mulf %248, %247 : vector<8x32xf32>
    %cst_95 = arith.constant 5.000000e-01 : f32
    %250 = vector.broadcast %cst_95 : f32 to vector<8x32xf32>
    %251 = arith.addf %249, %250 : vector<8x32xf32>
    %252 = arith.mulf %245, %220 : vector<8x32xf32>
    %253 = arith.mulf %240, %246 : vector<8x32xf32>
    %254 = arith.addf %252, %253 : vector<8x32xf32>
    %255 = math.tanh %254 : vector<8x32xf32>
    %256 = arith.mulf %251, %255 : vector<8x32xf32>
    %257 = arith.truncf %256 : vector<8x32xf32> to vector<8x32xbf16>
    %c0_i32_96 = arith.constant 0 : i32
    %258 = arith.addi %c0_i32_96, %228 : i32
    %259 = arith.index_cast %258 : i32 to index
    %c0_97 = arith.constant 0 : index
    %260 = vector.load %arg13[%259, %c0_97] : memref<64x32xbf16, #tpu.memory_space<vmem>>, vector<8x32xbf16>
    tpu.vector_store %arg13[%259, %c0_97], %257 {strides = array<i32>} : memref<64x32xbf16, #tpu.memory_space<vmem>>, vector<8x32xbf16>,
    %c7_i32 = arith.constant 7 : i32
    %c8_i32_98 = arith.constant 8 : i32
    %261 = arith.muli %c7_i32, %c8_i32_98 : i32
    %262 = tpu.assume_multiple %261, 8 : i32
    %263 = arith.truncf %256 : vector<8x32xf32> to vector<8x32xbf16>
    %cst_99 = arith.constant dense<0.000000e+00> : vector<8x128xf32>
    %264 = tpu.matmul %263, %13, %cst_99 {dimension_numbers = #tpu.dot_dimension_numbers<[1], [0], [0], [1], [0, 0, 1, 1], [], []>} : vector<8x32xbf16>, vector<32x128xbf16>, vector<8x128xf32> -> vector<8x128xf32>
    %265 = arith.index_cast %262 : i32 to index
    %c0_100 = arith.constant 0 : index
    %266 = vector.load %arg14[%265, %c0_100] : memref<64x128xbf16, #tpu.memory_space<vmem>>, vector<8x128xbf16>
    %267 = arith.extf %266 : vector<8x128xbf16> to vector<8x128xf32>
    %268 = arith.addf %264, %267 : vector<8x128xf32>
    %269 = math.tanh %268 : vector<8x128xf32>
    %270 = vector.extract_strided_slice %269 {offsets = [0, 0], sizes = [8, 32], strides = [1, 1]} : vector<8x128xf32> to vector<8x32xf32>
    %cst_101 = arith.constant 5.000000e-01 : f32
    %271 = vector.broadcast %cst_101 : f32 to vector<8x32xf32>
    %272 = arith.mulf %271, %270 : vector<8x32xf32>
    %cst_102 = arith.constant 5.000000e-01 : f32
    %273 = vector.broadcast %cst_102 : f32 to vector<8x32xf32>
    %274 = arith.addf %272, %273 : vector<8x32xf32>
    %275 = vector.extract_strided_slice %269 {offsets = [0, 32], sizes = [8, 32], strides = [1, 1]} : vector<8x128xf32> to vector<8x32xf32>
    %cst_103 = arith.constant 5.000000e-01 : f32
    %276 = vector.broadcast %cst_103 : f32 to vector<8x32xf32>
    %277 = arith.mulf %276, %275 : vector<8x32xf32>
    %cst_104 = arith.constant 5.000000e-01 : f32
    %278 = vector.broadcast %cst_104 : f32 to vector<8x32xf32>
    %279 = arith.addf %277, %278 : vector<8x32xf32>
    %280 = vector.extract_strided_slice %269 {offsets = [0, 64], sizes = [8, 32], strides = [1, 1]} : vector<8x128xf32> to vector<8x32xf32>
    %281 = vector.extract_strided_slice %269 {offsets = [0, 96], sizes = [8, 32], strides = [1, 1]} : vector<8x128xf32> to vector<8x32xf32>
    %cst_105 = arith.constant 5.000000e-01 : f32
    %282 = vector.broadcast %cst_105 : f32 to vector<8x32xf32>
    %283 = arith.mulf %282, %281 : vector<8x32xf32>
    %cst_106 = arith.constant 5.000000e-01 : f32
    %284 = vector.broadcast %cst_106 : f32 to vector<8x32xf32>
    %285 = arith.addf %283, %284 : vector<8x32xf32>
    %286 = arith.mulf %279, %254 : vector<8x32xf32>
    %287 = arith.mulf %274, %280 : vector<8x32xf32>
    %288 = arith.addf %286, %287 : vector<8x32xf32>
    %289 = math.tanh %288 : vector<8x32xf32>
    %290 = arith.mulf %285, %289 : vector<8x32xf32>
    %291 = arith.truncf %290 : vector<8x32xf32> to vector<8x32xbf16>
    %c0_i32_107 = arith.constant 0 : i32
    %292 = arith.addi %c0_i32_107, %262 : i32
    %293 = arith.index_cast %292 : i32 to index
    %c0_108 = arith.constant 0 : index
    %294 = vector.load %arg13[%293, %c0_108] : memref<64x32xbf16, #tpu.memory_space<vmem>>, vector<8x32xbf16>
    tpu.vector_store %arg13[%293, %c0_108], %291 {strides = array<i32>} : memref<64x32xbf16, #tpu.memory_space<vmem>>, vector<8x32xbf16>,
    %c8_i32_109 = arith.constant 8 : i32
    %c0_110 = arith.constant 0 : index
    %c0_111 = arith.constant 0 : index
    %295 = vector.load %arg7[%c0_110, %c0_111] : memref<32x128xbf16, #tpu.memory_space<vmem>>, vector<32x128xbf16>
    %c0_112 = arith.constant 0 : index
    %c0_113 = arith.constant 0 : index
    %296 = vector.load %arg8[%c0_112, %c0_113] : memref<32x128xbf16, #tpu.memory_space<vmem>>, vector<32x128xbf16>
    %c0_114 = arith.constant 0 : index
    %c0_115 = arith.constant 0 : index
    %297 = vector.load %arg9[%c0_114, %c0_115] : memref<1x128xf32, #tpu.memory_space<vmem>>, vector<1x128xf32>
    %cst_116 = arith.constant 0.000000e+00 : f32
    %298 = vector.broadcast %cst_116 : f32 to vector<8x32xf32>
    %cst_117 = arith.constant 0.000000e+00 : f32
    %299 = vector.broadcast %cst_117 : f32 to vector<8x32xf32>
    %c0_118 = arith.constant 0 : index
    %c0_119 = arith.constant 0 : index
    %300 = vector.load %arg13[%c0_118, %c0_119] : memref<64x32xbf16, #tpu.memory_space<vmem>>, vector<64x32xbf16>
    %cst_120 = arith.constant dense<0.000000e+00> : vector<64x128xf32>
    %301 = tpu.matmul %300, %295, %cst_120 {dimension_numbers = #tpu.dot_dimension_numbers<[1], [0], [0], [1], [0, 0, 1, 1], [], []>} : vector<64x32xbf16>, vector<32x128xbf16>, vector<64x128xf32> -> vector<64x128xf32>
    %302 = vector.broadcast %297 : vector<1x128xf32> to vector<64x128xf32>
    %303 = arith.addf %301, %302 : vector<64x128xf32>
    %304 = arith.truncf %303 : vector<64x128xf32> to vector<64x128xbf16>
    %c0_121 = arith.constant 0 : index
    %c0_122 = arith.constant 0 : index
    %305 = vector.load %arg14[%c0_121, %c0_122] : memref<64x128xbf16, #tpu.memory_space<vmem>>, vector<64x128xbf16>
    tpu.vector_store %arg14[%c0_121, %c0_122], %304 {strides = array<i32>} : memref<64x128xbf16, #tpu.memory_space<vmem>>, vector<64x128xbf16>,
    %c0_i32_123 = arith.constant 0 : i32
    %c8_i32_124 = arith.constant 8 : i32
    %306 = arith.muli %c0_i32_123, %c8_i32_124 : i32
    %307 = tpu.assume_multiple %306, 8 : i32
    %308 = arith.truncf %298 : vector<8x32xf32> to vector<8x32xbf16>
    %cst_125 = arith.constant dense<0.000000e+00> : vector<8x128xf32>
    %309 = tpu.matmul %308, %296, %cst_125 {dimension_numbers = #tpu.dot_dimension_numbers<[1], [0], [0], [1], [0, 0, 1, 1], [], []>} : vector<8x32xbf16>, vector<32x128xbf16>, vector<8x128xf32> -> vector<8x128xf32>
    %310 = arith.index_cast %307 : i32 to index
    %c0_126 = arith.constant 0 : index
    %311 = vector.load %arg14[%310, %c0_126] : memref<64x128xbf16, #tpu.memory_space<vmem>>, vector<8x128xbf16>
    %312 = arith.extf %311 : vector<8x128xbf16> to vector<8x128xf32>
    %313 = arith.addf %309, %312 : vector<8x128xf32>
    %314 = math.tanh %313 : vector<8x128xf32>
    %315 = vector.extract_strided_slice %314 {offsets = [0, 0], sizes = [8, 32], strides = [1, 1]} : vector<8x128xf32> to vector<8x32xf32>
    %cst_127 = arith.constant 5.000000e-01 : f32
    %316 = vector.broadcast %cst_127 : f32 to vector<8x32xf32>
    %317 = arith.mulf %316, %315 : vector<8x32xf32>
    %cst_128 = arith.constant 5.000000e-01 : f32
    %318 = vector.broadcast %cst_128 : f32 to vector<8x32xf32>
    %319 = arith.addf %317, %318 : vector<8x32xf32>
    %320 = vector.extract_strided_slice %314 {offsets = [0, 32], sizes = [8, 32], strides = [1, 1]} : vector<8x128xf32> to vector<8x32xf32>
    %cst_129 = arith.constant 5.000000e-01 : f32
    %321 = vector.broadcast %cst_129 : f32 to vector<8x32xf32>
    %322 = arith.mulf %321, %320 : vector<8x32xf32>
    %cst_130 = arith.constant 5.000000e-01 : f32
    %323 = vector.broadcast %cst_130 : f32 to vector<8x32xf32>
    %324 = arith.addf %322, %323 : vector<8x32xf32>
    %325 = vector.extract_strided_slice %314 {offsets = [0, 64], sizes = [8, 32], strides = [1, 1]} : vector<8x128xf32> to vector<8x32xf32>
    %326 = vector.extract_strided_slice %314 {offsets = [0, 96], sizes = [8, 32], strides = [1, 1]} : vector<8x128xf32> to vector<8x32xf32>
    %cst_131 = arith.constant 5.000000e-01 : f32
    %327 = vector.broadcast %cst_131 : f32 to vector<8x32xf32>
    %328 = arith.mulf %327, %326 : vector<8x32xf32>
    %cst_132 = arith.constant 5.000000e-01 : f32
    %329 = vector.broadcast %cst_132 : f32 to vector<8x32xf32>
    %330 = arith.addf %328, %329 : vector<8x32xf32>
    %331 = arith.mulf %324, %299 : vector<8x32xf32>
    %332 = arith.mulf %319, %325 : vector<8x32xf32>
    %333 = arith.addf %331, %332 : vector<8x32xf32>
    %334 = math.tanh %333 : vector<8x32xf32>
    %335 = arith.mulf %330, %334 : vector<8x32xf32>
    %c1_i32_133 = arith.constant 1 : i32
    %c8_i32_134 = arith.constant 8 : i32
    %336 = arith.muli %c1_i32_133, %c8_i32_134 : i32
    %337 = tpu.assume_multiple %336, 8 : i32
    %338 = arith.truncf %335 : vector<8x32xf32> to vector<8x32xbf16>
    %cst_135 = arith.constant dense<0.000000e+00> : vector<8x128xf32>
    %339 = tpu.matmul %338, %296, %cst_135 {dimension_numbers = #tpu.dot_dimension_numbers<[1], [0], [0], [1], [0, 0, 1, 1], [], []>} : vector<8x32xbf16>, vector<32x128xbf16>, vector<8x128xf32> -> vector<8x128xf32>
    %340 = arith.index_cast %337 : i32 to index
    %c0_136 = arith.constant 0 : index
    %341 = vector.load %arg14[%340, %c0_136] : memref<64x128xbf16, #tpu.memory_space<vmem>>, vector<8x128xbf16>
    %342 = arith.extf %341 : vector<8x128xbf16> to vector<8x128xf32>
    %343 = arith.addf %339, %342 : vector<8x128xf32>
    %344 = math.tanh %343 : vector<8x128xf32>
    %345 = vector.extract_strided_slice %344 {offsets = [0, 0], sizes = [8, 32], strides = [1, 1]} : vector<8x128xf32> to vector<8x32xf32>
    %cst_137 = arith.constant 5.000000e-01 : f32
    %346 = vector.broadcast %cst_137 : f32 to vector<8x32xf32>
    %347 = arith.mulf %346, %345 : vector<8x32xf32>
    %cst_138 = arith.constant 5.000000e-01 : f32
    %348 = vector.broadcast %cst_138 : f32 to vector<8x32xf32>
    %349 = arith.addf %347, %348 : vector<8x32xf32>
    %350 = vector.extract_strided_slice %344 {offsets = [0, 32], sizes = [8, 32], strides = [1, 1]} : vector<8x128xf32> to vector<8x32xf32>
    %cst_139 = arith.constant 5.000000e-01 : f32
    %351 = vector.broadcast %cst_139 : f32 to vector<8x32xf32>
    %352 = arith.mulf %351, %350 : vector<8x32xf32>
    %cst_140 = arith.constant 5.000000e-01 : f32
    %353 = vector.broadcast %cst_140 : f32 to vector<8x32xf32>
    %354 = arith.addf %352, %353 : vector<8x32xf32>
    %355 = vector.extract_strided_slice %344 {offsets = [0, 64], sizes = [8, 32], strides = [1, 1]} : vector<8x128xf32> to vector<8x32xf32>
    %356 = vector.extract_strided_slice %344 {offsets = [0, 96], sizes = [8, 32], strides = [1, 1]} : vector<8x128xf32> to vector<8x32xf32>
    %cst_141 = arith.constant 5.000000e-01 : f32
    %357 = vector.broadcast %cst_141 : f32 to vector<8x32xf32>
    %358 = arith.mulf %357, %356 : vector<8x32xf32>
    %cst_142 = arith.constant 5.000000e-01 : f32
    %359 = vector.broadcast %cst_142 : f32 to vector<8x32xf32>
    %360 = arith.addf %358, %359 : vector<8x32xf32>
    %361 = arith.mulf %354, %333 : vector<8x32xf32>
    %362 = arith.mulf %349, %355 : vector<8x32xf32>
    %363 = arith.addf %361, %362 : vector<8x32xf32>
    %364 = math.tanh %363 : vector<8x32xf32>
    %365 = arith.mulf %360, %364 : vector<8x32xf32>
    %c2_i32_143 = arith.constant 2 : i32
    %c8_i32_144 = arith.constant 8 : i32
    %366 = arith.muli %c2_i32_143, %c8_i32_144 : i32
    %367 = tpu.assume_multiple %366, 8 : i32
    %368 = arith.truncf %365 : vector<8x32xf32> to vector<8x32xbf16>
    %cst_145 = arith.constant dense<0.000000e+00> : vector<8x128xf32>
    %369 = tpu.matmul %368, %296, %cst_145 {dimension_numbers = #tpu.dot_dimension_numbers<[1], [0], [0], [1], [0, 0, 1, 1], [], []>} : vector<8x32xbf16>, vector<32x128xbf16>, vector<8x128xf32> -> vector<8x128xf32>
    %370 = arith.index_cast %367 : i32 to index
    %c0_146 = arith.constant 0 : index
    %371 = vector.load %arg14[%370, %c0_146] : memref<64x128xbf16, #tpu.memory_space<vmem>>, vector<8x128xbf16>
    %372 = arith.extf %371 : vector<8x128xbf16> to vector<8x128xf32>
    %373 = arith.addf %369, %372 : vector<8x128xf32>
    %374 = math.tanh %373 : vector<8x128xf32>
    %375 = vector.extract_strided_slice %374 {offsets = [0, 0], sizes = [8, 32], strides = [1, 1]} : vector<8x128xf32> to vector<8x32xf32>
    %cst_147 = arith.constant 5.000000e-01 : f32
    %376 = vector.broadcast %cst_147 : f32 to vector<8x32xf32>
    %377 = arith.mulf %376, %375 : vector<8x32xf32>
    %cst_148 = arith.constant 5.000000e-01 : f32
    %378 = vector.broadcast %cst_148 : f32 to vector<8x32xf32>
    %379 = arith.addf %377, %378 : vector<8x32xf32>
    %380 = vector.extract_strided_slice %374 {offsets = [0, 32], sizes = [8, 32], strides = [1, 1]} : vector<8x128xf32> to vector<8x32xf32>
    %cst_149 = arith.constant 5.000000e-01 : f32
    %381 = vector.broadcast %cst_149 : f32 to vector<8x32xf32>
    %382 = arith.mulf %381, %380 : vector<8x32xf32>
    %cst_150 = arith.constant 5.000000e-01 : f32
    %383 = vector.broadcast %cst_150 : f32 to vector<8x32xf32>
    %384 = arith.addf %382, %383 : vector<8x32xf32>
    %385 = vector.extract_strided_slice %374 {offsets = [0, 64], sizes = [8, 32], strides = [1, 1]} : vector<8x128xf32> to vector<8x32xf32>
    %386 = vector.extract_strided_slice %374 {offsets = [0, 96], sizes = [8, 32], strides = [1, 1]} : vector<8x128xf32> to vector<8x32xf32>
    %cst_151 = arith.constant 5.000000e-01 : f32
    %387 = vector.broadcast %cst_151 : f32 to vector<8x32xf32>
    %388 = arith.mulf %387, %386 : vector<8x32xf32>
    %cst_152 = arith.constant 5.000000e-01 : f32
    %389 = vector.broadcast %cst_152 : f32 to vector<8x32xf32>
    %390 = arith.addf %388, %389 : vector<8x32xf32>
    %391 = arith.mulf %384, %363 : vector<8x32xf32>
    %392 = arith.mulf %379, %385 : vector<8x32xf32>
    %393 = arith.addf %391, %392 : vector<8x32xf32>
    %394 = math.tanh %393 : vector<8x32xf32>
    %395 = arith.mulf %390, %394 : vector<8x32xf32>
    %c3_i32_153 = arith.constant 3 : i32
    %c8_i32_154 = arith.constant 8 : i32
    %396 = arith.muli %c3_i32_153, %c8_i32_154 : i32
    %397 = tpu.assume_multiple %396, 8 : i32
    %398 = arith.truncf %395 : vector<8x32xf32> to vector<8x32xbf16>
    %cst_155 = arith.constant dense<0.000000e+00> : vector<8x128xf32>
    %399 = tpu.matmul %398, %296, %cst_155 {dimension_numbers = #tpu.dot_dimension_numbers<[1], [0], [0], [1], [0, 0, 1, 1], [], []>} : vector<8x32xbf16>, vector<32x128xbf16>, vector<8x128xf32> -> vector<8x128xf32>
    %400 = arith.index_cast %397 : i32 to index
    %c0_156 = arith.constant 0 : index
    %401 = vector.load %arg14[%400, %c0_156] : memref<64x128xbf16, #tpu.memory_space<vmem>>, vector<8x128xbf16>
    %402 = arith.extf %401 : vector<8x128xbf16> to vector<8x128xf32>
    %403 = arith.addf %399, %402 : vector<8x128xf32>
    %404 = math.tanh %403 : vector<8x128xf32>
    %405 = vector.extract_strided_slice %404 {offsets = [0, 0], sizes = [8, 32], strides = [1, 1]} : vector<8x128xf32> to vector<8x32xf32>
    %cst_157 = arith.constant 5.000000e-01 : f32
    %406 = vector.broadcast %cst_157 : f32 to vector<8x32xf32>
    %407 = arith.mulf %406, %405 : vector<8x32xf32>
    %cst_158 = arith.constant 5.000000e-01 : f32
    %408 = vector.broadcast %cst_158 : f32 to vector<8x32xf32>
    %409 = arith.addf %407, %408 : vector<8x32xf32>
    %410 = vector.extract_strided_slice %404 {offsets = [0, 32], sizes = [8, 32], strides = [1, 1]} : vector<8x128xf32> to vector<8x32xf32>
    %cst_159 = arith.constant 5.000000e-01 : f32
    %411 = vector.broadcast %cst_159 : f32 to vector<8x32xf32>
    %412 = arith.mulf %411, %410 : vector<8x32xf32>
    %cst_160 = arith.constant 5.000000e-01 : f32
    %413 = vector.broadcast %cst_160 : f32 to vector<8x32xf32>
    %414 = arith.addf %412, %413 : vector<8x32xf32>
    %415 = vector.extract_strided_slice %404 {offsets = [0, 64], sizes = [8, 32], strides = [1, 1]} : vector<8x128xf32> to vector<8x32xf32>
    %416 = vector.extract_strided_slice %404 {offsets = [0, 96], sizes = [8, 32], strides = [1, 1]} : vector<8x128xf32> to vector<8x32xf32>
    %cst_161 = arith.constant 5.000000e-01 : f32
    %417 = vector.broadcast %cst_161 : f32 to vector<8x32xf32>
    %418 = arith.mulf %417, %416 : vector<8x32xf32>
    %cst_162 = arith.constant 5.000000e-01 : f32
    %419 = vector.broadcast %cst_162 : f32 to vector<8x32xf32>
    %420 = arith.addf %418, %419 : vector<8x32xf32>
    %421 = arith.mulf %414, %393 : vector<8x32xf32>
    %422 = arith.mulf %409, %415 : vector<8x32xf32>
    %423 = arith.addf %421, %422 : vector<8x32xf32>
    %424 = math.tanh %423 : vector<8x32xf32>
    %425 = arith.mulf %420, %424 : vector<8x32xf32>
    %c4_i32_163 = arith.constant 4 : i32
    %c8_i32_164 = arith.constant 8 : i32
    %426 = arith.muli %c4_i32_163, %c8_i32_164 : i32
    %427 = tpu.assume_multiple %426, 8 : i32
    %428 = arith.truncf %425 : vector<8x32xf32> to vector<8x32xbf16>
    %cst_165 = arith.constant dense<0.000000e+00> : vector<8x128xf32>
    %429 = tpu.matmul %428, %296, %cst_165 {dimension_numbers = #tpu.dot_dimension_numbers<[1], [0], [0], [1], [0, 0, 1, 1], [], []>} : vector<8x32xbf16>, vector<32x128xbf16>, vector<8x128xf32> -> vector<8x128xf32>
    %430 = arith.index_cast %427 : i32 to index
    %c0_166 = arith.constant 0 : index
    %431 = vector.load %arg14[%430, %c0_166] : memref<64x128xbf16, #tpu.memory_space<vmem>>, vector<8x128xbf16>
    %432 = arith.extf %431 : vector<8x128xbf16> to vector<8x128xf32>
    %433 = arith.addf %429, %432 : vector<8x128xf32>
    %434 = math.tanh %433 : vector<8x128xf32>
    %435 = vector.extract_strided_slice %434 {offsets = [0, 0], sizes = [8, 32], strides = [1, 1]} : vector<8x128xf32> to vector<8x32xf32>
    %cst_167 = arith.constant 5.000000e-01 : f32
    %436 = vector.broadcast %cst_167 : f32 to vector<8x32xf32>
    %437 = arith.mulf %436, %435 : vector<8x32xf32>
    %cst_168 = arith.constant 5.000000e-01 : f32
    %438 = vector.broadcast %cst_168 : f32 to vector<8x32xf32>
    %439 = arith.addf %437, %438 : vector<8x32xf32>
    %440 = vector.extract_strided_slice %434 {offsets = [0, 32], sizes = [8, 32], strides = [1, 1]} : vector<8x128xf32> to vector<8x32xf32>
    %cst_169 = arith.constant 5.000000e-01 : f32
    %441 = vector.broadcast %cst_169 : f32 to vector<8x32xf32>
    %442 = arith.mulf %441, %440 : vector<8x32xf32>
    %cst_170 = arith.constant 5.000000e-01 : f32
    %443 = vector.broadcast %cst_170 : f32 to vector<8x32xf32>
    %444 = arith.addf %442, %443 : vector<8x32xf32>
    %445 = vector.extract_strided_slice %434 {offsets = [0, 64], sizes = [8, 32], strides = [1, 1]} : vector<8x128xf32> to vector<8x32xf32>
    %446 = vector.extract_strided_slice %434 {offsets = [0, 96], sizes = [8, 32], strides = [1, 1]} : vector<8x128xf32> to vector<8x32xf32>
    %cst_171 = arith.constant 5.000000e-01 : f32
    %447 = vector.broadcast %cst_171 : f32 to vector<8x32xf32>
    %448 = arith.mulf %447, %446 : vector<8x32xf32>
    %cst_172 = arith.constant 5.000000e-01 : f32
    %449 = vector.broadcast %cst_172 : f32 to vector<8x32xf32>
    %450 = arith.addf %448, %449 : vector<8x32xf32>
    %451 = arith.mulf %444, %423 : vector<8x32xf32>
    %452 = arith.mulf %439, %445 : vector<8x32xf32>
    %453 = arith.addf %451, %452 : vector<8x32xf32>
    %454 = math.tanh %453 : vector<8x32xf32>
    %455 = arith.mulf %450, %454 : vector<8x32xf32>
    %c5_i32_173 = arith.constant 5 : i32
    %c8_i32_174 = arith.constant 8 : i32
    %456 = arith.muli %c5_i32_173, %c8_i32_174 : i32
    %457 = tpu.assume_multiple %456, 8 : i32
    %458 = arith.truncf %455 : vector<8x32xf32> to vector<8x32xbf16>
    %cst_175 = arith.constant dense<0.000000e+00> : vector<8x128xf32>
    %459 = tpu.matmul %458, %296, %cst_175 {dimension_numbers = #tpu.dot_dimension_numbers<[1], [0], [0], [1], [0, 0, 1, 1], [], []>} : vector<8x32xbf16>, vector<32x128xbf16>, vector<8x128xf32> -> vector<8x128xf32>
    %460 = arith.index_cast %457 : i32 to index
    %c0_176 = arith.constant 0 : index
    %461 = vector.load %arg14[%460, %c0_176] : memref<64x128xbf16, #tpu.memory_space<vmem>>, vector<8x128xbf16>
    %462 = arith.extf %461 : vector<8x128xbf16> to vector<8x128xf32>
    %463 = arith.addf %459, %462 : vector<8x128xf32>
    %464 = math.tanh %463 : vector<8x128xf32>
    %465 = vector.extract_strided_slice %464 {offsets = [0, 0], sizes = [8, 32], strides = [1, 1]} : vector<8x128xf32> to vector<8x32xf32>
    %cst_177 = arith.constant 5.000000e-01 : f32
    %466 = vector.broadcast %cst_177 : f32 to vector<8x32xf32>
    %467 = arith.mulf %466, %465 : vector<8x32xf32>
    %cst_178 = arith.constant 5.000000e-01 : f32
    %468 = vector.broadcast %cst_178 : f32 to vector<8x32xf32>
    %469 = arith.addf %467, %468 : vector<8x32xf32>
    %470 = vector.extract_strided_slice %464 {offsets = [0, 32], sizes = [8, 32], strides = [1, 1]} : vector<8x128xf32> to vector<8x32xf32>
    %cst_179 = arith.constant 5.000000e-01 : f32
    %471 = vector.broadcast %cst_179 : f32 to vector<8x32xf32>
    %472 = arith.mulf %471, %470 : vector<8x32xf32>
    %cst_180 = arith.constant 5.000000e-01 : f32
    %473 = vector.broadcast %cst_180 : f32 to vector<8x32xf32>
    %474 = arith.addf %472, %473 : vector<8x32xf32>
    %475 = vector.extract_strided_slice %464 {offsets = [0, 64], sizes = [8, 32], strides = [1, 1]} : vector<8x128xf32> to vector<8x32xf32>
    %476 = vector.extract_strided_slice %464 {offsets = [0, 96], sizes = [8, 32], strides = [1, 1]} : vector<8x128xf32> to vector<8x32xf32>
    %cst_181 = arith.constant 5.000000e-01 : f32
    %477 = vector.broadcast %cst_181 : f32 to vector<8x32xf32>
    %478 = arith.mulf %477, %476 : vector<8x32xf32>
    %cst_182 = arith.constant 5.000000e-01 : f32
    %479 = vector.broadcast %cst_182 : f32 to vector<8x32xf32>
    %480 = arith.addf %478, %479 : vector<8x32xf32>
    %481 = arith.mulf %474, %453 : vector<8x32xf32>
    %482 = arith.mulf %469, %475 : vector<8x32xf32>
    %483 = arith.addf %481, %482 : vector<8x32xf32>
    %484 = math.tanh %483 : vector<8x32xf32>
    %485 = arith.mulf %480, %484 : vector<8x32xf32>
    %c6_i32_183 = arith.constant 6 : i32
    %c8_i32_184 = arith.constant 8 : i32
    %486 = arith.muli %c6_i32_183, %c8_i32_184 : i32
    %487 = tpu.assume_multiple %486, 8 : i32
    %488 = arith.truncf %485 : vector<8x32xf32> to vector<8x32xbf16>
    %cst_185 = arith.constant dense<0.000000e+00> : vector<8x128xf32>
    %489 = tpu.matmul %488, %296, %cst_185 {dimension_numbers = #tpu.dot_dimension_numbers<[1], [0], [0], [1], [0, 0, 1, 1], [], []>} : vector<8x32xbf16>, vector<32x128xbf16>, vector<8x128xf32> -> vector<8x128xf32>
    %490 = arith.index_cast %487 : i32 to index
    %c0_186 = arith.constant 0 : index
    %491 = vector.load %arg14[%490, %c0_186] : memref<64x128xbf16, #tpu.memory_space<vmem>>, vector<8x128xbf16>
    %492 = arith.extf %491 : vector<8x128xbf16> to vector<8x128xf32>
    %493 = arith.addf %489, %492 : vector<8x128xf32>
    %494 = math.tanh %493 : vector<8x128xf32>
    %495 = vector.extract_strided_slice %494 {offsets = [0, 0], sizes = [8, 32], strides = [1, 1]} : vector<8x128xf32> to vector<8x32xf32>
    %cst_187 = arith.constant 5.000000e-01 : f32
    %496 = vector.broadcast %cst_187 : f32 to vector<8x32xf32>
    %497 = arith.mulf %496, %495 : vector<8x32xf32>
    %cst_188 = arith.constant 5.000000e-01 : f32
    %498 = vector.broadcast %cst_188 : f32 to vector<8x32xf32>
    %499 = arith.addf %497, %498 : vector<8x32xf32>
    %500 = vector.extract_strided_slice %494 {offsets = [0, 32], sizes = [8, 32], strides = [1, 1]} : vector<8x128xf32> to vector<8x32xf32>
    %cst_189 = arith.constant 5.000000e-01 : f32
    %501 = vector.broadcast %cst_189 : f32 to vector<8x32xf32>
    %502 = arith.mulf %501, %500 : vector<8x32xf32>
    %cst_190 = arith.constant 5.000000e-01 : f32
    %503 = vector.broadcast %cst_190 : f32 to vector<8x32xf32>
    %504 = arith.addf %502, %503 : vector<8x32xf32>
    %505 = vector.extract_strided_slice %494 {offsets = [0, 64], sizes = [8, 32], strides = [1, 1]} : vector<8x128xf32> to vector<8x32xf32>
    %506 = vector.extract_strided_slice %494 {offsets = [0, 96], sizes = [8, 32], strides = [1, 1]} : vector<8x128xf32> to vector<8x32xf32>
    %cst_191 = arith.constant 5.000000e-01 : f32
    %507 = vector.broadcast %cst_191 : f32 to vector<8x32xf32>
    %508 = arith.mulf %507, %506 : vector<8x32xf32>
    %cst_192 = arith.constant 5.000000e-01 : f32
    %509 = vector.broadcast %cst_192 : f32 to vector<8x32xf32>
    %510 = arith.addf %508, %509 : vector<8x32xf32>
    %511 = arith.mulf %504, %483 : vector<8x32xf32>
    %512 = arith.mulf %499, %505 : vector<8x32xf32>
    %513 = arith.addf %511, %512 : vector<8x32xf32>
    %514 = math.tanh %513 : vector<8x32xf32>
    %515 = arith.mulf %510, %514 : vector<8x32xf32>
    %c7_i32_193 = arith.constant 7 : i32
    %c8_i32_194 = arith.constant 8 : i32
    %516 = arith.muli %c7_i32_193, %c8_i32_194 : i32
    %517 = tpu.assume_multiple %516, 8 : i32
    %518 = arith.truncf %515 : vector<8x32xf32> to vector<8x32xbf16>
    %cst_195 = arith.constant dense<0.000000e+00> : vector<8x128xf32>
    %519 = tpu.matmul %518, %296, %cst_195 {dimension_numbers = #tpu.dot_dimension_numbers<[1], [0], [0], [1], [0, 0, 1, 1], [], []>} : vector<8x32xbf16>, vector<32x128xbf16>, vector<8x128xf32> -> vector<8x128xf32>
    %520 = arith.index_cast %517 : i32 to index
    %c0_196 = arith.constant 0 : index
    %521 = vector.load %arg14[%520, %c0_196] : memref<64x128xbf16, #tpu.memory_space<vmem>>, vector<8x128xbf16>
    %522 = arith.extf %521 : vector<8x128xbf16> to vector<8x128xf32>
    %523 = arith.addf %519, %522 : vector<8x128xf32>
    %524 = math.tanh %523 : vector<8x128xf32>
    %525 = vector.extract_strided_slice %524 {offsets = [0, 0], sizes = [8, 32], strides = [1, 1]} : vector<8x128xf32> to vector<8x32xf32>
    %cst_197 = arith.constant 5.000000e-01 : f32
    %526 = vector.broadcast %cst_197 : f32 to vector<8x32xf32>
    %527 = arith.mulf %526, %525 : vector<8x32xf32>
    %cst_198 = arith.constant 5.000000e-01 : f32
    %528 = vector.broadcast %cst_198 : f32 to vector<8x32xf32>
    %529 = arith.addf %527, %528 : vector<8x32xf32>
    %530 = vector.extract_strided_slice %524 {offsets = [0, 32], sizes = [8, 32], strides = [1, 1]} : vector<8x128xf32> to vector<8x32xf32>
    %cst_199 = arith.constant 5.000000e-01 : f32
    %531 = vector.broadcast %cst_199 : f32 to vector<8x32xf32>
    %532 = arith.mulf %531, %530 : vector<8x32xf32>
    %cst_200 = arith.constant 5.000000e-01 : f32
    %533 = vector.broadcast %cst_200 : f32 to vector<8x32xf32>
    %534 = arith.addf %532, %533 : vector<8x32xf32>
    %535 = vector.extract_strided_slice %524 {offsets = [0, 64], sizes = [8, 32], strides = [1, 1]} : vector<8x128xf32> to vector<8x32xf32>
    %536 = vector.extract_strided_slice %524 {offsets = [0, 96], sizes = [8, 32], strides = [1, 1]} : vector<8x128xf32> to vector<8x32xf32>
    %cst_201 = arith.constant 5.000000e-01 : f32
    %537 = vector.broadcast %cst_201 : f32 to vector<8x32xf32>
    %538 = arith.mulf %537, %536 : vector<8x32xf32>
    %cst_202 = arith.constant 5.000000e-01 : f32
    %539 = vector.broadcast %cst_202 : f32 to vector<8x32xf32>
    %540 = arith.addf %538, %539 : vector<8x32xf32>
    %541 = arith.mulf %534, %513 : vector<8x32xf32>
    %542 = arith.mulf %529, %535 : vector<8x32xf32>
    %543 = arith.addf %541, %542 : vector<8x32xf32>
    %544 = math.tanh %543 : vector<8x32xf32>
    %545 = arith.mulf %540, %544 : vector<8x32xf32>
    %c8_i32_203 = arith.constant 8 : i32
    %c0_204 = arith.constant 0 : index
    %c0_205 = arith.constant 0 : index
    %546 = vector.load %arg10[%c0_204, %c0_205] : memref<1x32xf32, #tpu.memory_space<vmem>>, vector<1x32xf32>
    %547 = vector.broadcast %546 : vector<1x32xf32> to vector<8x32xf32>
    %548 = arith.mulf %545, %547 : vector<8x32xf32>
    %cst_206 = arith.constant dense<0.000000e+00> : vector<8xf32>
    %549 = vector.multi_reduction <add>, %548, %cst_206 [1] : vector<8x32xf32> to vector<8xf32>
    %550 = vector.shape_cast %549 : vector<8xf32> to vector<8x1xf32>
    %c0_207 = arith.constant 0 : index
    %c0_208 = arith.constant 0 : index
    %551 = vector.load %arg11[%c0_207, %c0_208] : memref<1x1xf32, #tpu.memory_space<vmem>>, vector<1x1xf32>
    %552 = vector.broadcast %551 : vector<1x1xf32> to vector<8x1xf32>
    %553 = arith.addf %550, %552 : vector<8x1xf32>
    %cst_209 = arith.constant 0.000000e+00 : f32
    %554 = vector.broadcast %cst_209 : f32 to vector<8x1xf32>
    %555 = arith.maximumf %553, %554 : vector<8x1xf32>
    %c0_210 = arith.constant 0 : index
    %c0_211 = arith.constant 0 : index
    %556 = vector.load %arg12[%c0_210, %c0_211] : memref<8x1xf32, #tpu.memory_space<vmem>>, vector<8x1xf32>
    tpu.vector_store %arg12[%c0_210, %c0_211], %555 {strides = array<i32>} : memref<8x1xf32, #tpu.memory_space<vmem>>, vector<8x1xf32>,
    return
  }
  func.func @transform_0(%arg0: i32) -> (i32, i32, i32) {
    %c0_i32 = arith.constant 0 : i32
    %c0_i32_0 = arith.constant 0 : i32
    %c0_i32_1 = arith.constant 0 : i32
    return %c0_i32, %arg0, %c0_i32_0 : i32, i32, i32
  }
  func.func @transform_1(%arg0: i32) -> (i32, i32) {
    %c0_i32 = arith.constant 0 : i32
    %c0_i32_0 = arith.constant 0 : i32
    %c0_i32_1 = arith.constant 0 : i32
    return %c0_i32, %c0_i32_0 : i32, i32
  }
  func.func @transform_2(%arg0: i32) -> (i32, i32) {
    %c0_i32 = arith.constant 0 : i32
    %c0_i32_0 = arith.constant 0 : i32
    %c0_i32_1 = arith.constant 0 : i32
    return %c0_i32, %c0_i32_0 : i32, i32
  }
  func.func @transform_3(%arg0: i32) -> (i32, i32) {
    %c0_i32 = arith.constant 0 : i32
    %c0_i32_0 = arith.constant 0 : i32
    %c0_i32_1 = arith.constant 0 : i32
    return %c0_i32, %c0_i32_0 : i32, i32
  }
  func.func @transform_4(%arg0: i32) -> (i32, i32) {
    %c0_i32 = arith.constant 0 : i32
    %c0_i32_0 = arith.constant 0 : i32
    %c0_i32_1 = arith.constant 0 : i32
    return %c0_i32, %c0_i32_0 : i32, i32
  }
  func.func @transform_5(%arg0: i32) -> (i32, i32) {
    %c0_i32 = arith.constant 0 : i32
    %c0_i32_0 = arith.constant 0 : i32
    %c0_i32_1 = arith.constant 0 : i32
    return %c0_i32, %c0_i32_0 : i32, i32
  }
  func.func @transform_6(%arg0: i32) -> (i32, i32) {
    %c0_i32 = arith.constant 0 : i32
    %c0_i32_0 = arith.constant 0 : i32
    %c0_i32_1 = arith.constant 0 : i32
    return %c0_i32, %c0_i32_0 : i32, i32
  }
  func.func @transform_7(%arg0: i32) -> (i32, i32) {
    %c0_i32 = arith.constant 0 : i32
    %c0_i32_0 = arith.constant 0 : i32
    %c0_i32_1 = arith.constant 0 : i32
    return %c0_i32, %c0_i32_0 : i32, i32
  }
  func.func @transform_8(%arg0: i32) -> (i32, i32) {
    %c0_i32 = arith.constant 0 : i32
    %c0_i32_0 = arith.constant 0 : i32
    %c0_i32_1 = arith.constant 0 : i32
    return %c0_i32, %c0_i32_0 : i32, i32
  }
  func.func @transform_9(%arg0: i32) -> (i32, i32) {
    %c0_i32 = arith.constant 0 : i32
    %c0_i32_0 = arith.constant 0 : i32
    %c0_i32_1 = arith.constant 0 : i32
    return %c0_i32, %c0_i32_0 : i32, i32
  }
  func.func @transform_10(%arg0: i32) -> (i32, i32) {
    %c0_i32 = arith.constant 0 : i32
    %c0_i32_0 = arith.constant 0 : i32
    %c0_i32_1 = arith.constant 0 : i32
    return %c0_i32, %c0_i32_0 : i32, i32
  }
  func.func @transform_11(%arg0: i32) -> (i32, i32) {
    %c0_i32 = arith.constant 0 : i32
    %c0_i32_0 = arith.constant 0 : i32
    return %arg0, %c0_i32 : i32, i32
  }
}

</mosaic_0001>

<llo_original>
// kernel: tpu_custom_call.1
$region0: #{tpu_custom_call.1}
  #allocation0 [shape = 'u32[]', space=smem, size = 0x4, offset = 0x4, fixed_abs, tag = 'smem constant byte address 0x4 - core index']
  #allocation1 [shape = 'u32[72,128]{1,0:T(1,128)}', space=vmem, size = 0x9000, scoped, tag = 'internal scratch']
  #allocation2 [shape = 'bf16[64,32]{1,0:T(8,128)(2,1)}', space=vmem, size = 0x4000, scoped, tag = 'scratch operand']
  #allocation3 [shape = 'bf16[64,128]{1,0:T(8,128)(2,1)}', space=vmem, size = 0x4000, scoped, tag = 'scratch operand']
  #allocation4 [shape = 'f32[1,1]{1,0:T(1,128)S(1)}', space=vmem, size = 0x200, scoped, tag = 'scoped memory for tpu_custom_call.1']
  %s0 = inlined_call_operand.hbm [shape: f32[8,8,16], index: 0, kind: input, shape index: {}]
  %s1 = inlined_call_operand.hbm [shape: bf16[16,32], index: 1, kind: input, shape index: {}]
  %s2 = inlined_call_operand.vmem [shape: f32[1,32], index: 2, kind: input, shape index: {}]
  %s3 = inlined_call_operand.hbm [shape: bf16[32,128], index: 3, kind: input, shape index: {}]
  %s4 = inlined_call_operand.hbm [shape: bf16[32,128], index: 4, kind: input, shape index: {}]
  %s5 = inlined_call_operand.vmem [shape: f32[1,128], index: 5, kind: input, shape index: {}]
  %s6 = inlined_call_operand.hbm [shape: bf16[32,128], index: 6, kind: input, shape index: {}]
  %s7 = inlined_call_operand.hbm [shape: bf16[32,128], index: 7, kind: input, shape index: {}]
  %s8 = inlined_call_operand.vmem [shape: f32[1,128], index: 8, kind: input, shape index: {}]
  %s9 = inlined_call_operand.vmem [shape: f32[1,32], index: 9, kind: input, shape index: {}]
  %s10 = inlined_call_operand.<no memory space> [shape: f32[1,1], index: 10, kind: input, shape index: {}]
  %s11 = inlined_call_operand.vmem [shape: f32[8,1], index: 11, kind: output, shape index: {}]
  %s12 = sld [smem:[#allocation0]]
  $region78: #{tpu_custom_call.1} parent=0
    _
  %s14 = ssub.s32 1, %s12
  %s15 = scalar_select 0, %s14, %s12
  %v16 = vstv %s10
  %17 = vst [vmem:[#allocation4] sm:$0x1] %v16
  $region1: #{tpu_custom_call.1} parent=0
    #allocation5 [shape = 'u8[32768]{0}', space=vmem, size = 0x8000, scoped, tag = 'input window, operand 0, single buffered']
    #allocation6 [shape = 's32[1]{0}', space=sflag, size = 0x4, scoped, tag = 'scoped memory for tpu_custom_call.1']
    #allocation7 [shape = 'u8[4096]{0}', space=vmem, size = 0x1000, scoped, tag = 'input window, operand 1, single buffered']
    #allocation8 [shape = 's32[1]{0}', space=sflag, size = 0x4, scoped, tag = 'scoped memory for tpu_custom_call.1']
    #allocation9 [shape = 'u8[8192]{0}', space=vmem, size = 0x2000, scoped, tag = 'input window, operand 3, single buffered']
    #allocation10 [shape = 'u8[8192]{0}', space=vmem, size = 0x2000, scoped, tag = 'input window, operand 4, single buffered']
    #allocation11 [shape = 's32[1]{0}', space=sflag, size = 0x4, scoped, tag = 'scoped memory for tpu_custom_call.1']
    #allocation12 [shape = 'u8[8192]{0}', space=vmem, size = 0x2000, scoped, tag = 'input window, operand 6, single buffered']
    #allocation13 [shape = 'u8[8192]{0}', space=vmem, size = 0x2000, scoped, tag = 'input window, operand 7, single buffered']
    #allocation14 [shape = 's32[1]{0}', space=sflag, size = 0x4, scoped, tag = 'scoped memory for tpu_custom_call.1']
    %18 = vsyncpa [#allocation6], 0
    %19 = vsyncpa [#allocation8], 0
    %20 = vsyncpa [#allocation11], 0
    %21 = vsyncpa [#allocation14], 0
    // Predicated region
    $region2: #{tpu_custom_call.1} parent=1 // pred_check
      _
    $region3: #{tpu_custom_call.1} parent=1 // pred_check_branch
      %23 = sbr.rel (0) target = $region5
    $region4: #{tpu_custom_call.1} parent=1 // pred_region
      %25 = vsyncadd [#allocation6], 0
      %s26 = sshll.u32 %s0, 4
      %s27 = int_to_ptr.hbm [resolvable:$true] %s26
      %s28 = sshll.u32 [#allocation5], 4
      %s29 = int_to_ptr.vmem [resolvable:$true] %s28
      %34 = dma.hbm_to_vmem [thread:$0]  %s27, 1024, %s29, [#allocation6], 128, 128, 8
    $region5: #{tpu_custom_call.1} parent=1 // pred_fallthru
      _
    // Predicated region
    $region6: #{tpu_custom_call.1} parent=1 // pred_check
      _
    $region7: #{tpu_custom_call.1} parent=1 // pred_check_branch
      %36 = sbr.rel (0) target = $region9
    $region8: #{tpu_custom_call.1} parent=1 // pred_region
      %38 = vsyncadd [#allocation8], 0
      %s39 = sshll.u32 %s1, 4
      %s40 = int_to_ptr.hbm [resolvable:$true] %s39
      %s41 = sshll.u32 [#allocation7], 4
      %s42 = int_to_ptr.vmem [resolvable:$true] %s41
      %47 = dma.hbm_to_vmem [thread:$0]  %s40, 128, %s42, [#allocation8], 64, 64, 4
    $region9: #{tpu_custom_call.1} parent=1 // pred_fallthru
      _
    // Predicated region
    $region10: #{tpu_custom_call.1} parent=1 // pred_check
      _
    $region11: #{tpu_custom_call.1} parent=1 // pred_check_branch
      %49 = sbr.rel (0) target = $region13
    $region12: #{tpu_custom_call.1} parent=1 // pred_region
      _
    $region13: #{tpu_custom_call.1} parent=1 // pred_fallthru
      _
    // Predicated region
    $region14: #{tpu_custom_call.1} parent=1 // pred_check
      _
    $region15: #{tpu_custom_call.1} parent=1 // pred_check_branch
      %51 = sbr.rel (0) target = $region17
    $region16: #{tpu_custom_call.1} parent=1 // pred_region
      %53 = vsyncadd [#allocation8], 0
      %s54 = sshll.u32 %s3, 4
      %s55 = int_to_ptr.hbm [resolvable:$true] %s54
      %s56 = sshll.u32 [#allocation9], 4
      %s57 = int_to_ptr.vmem [resolvable:$true] %s56
      %62 = dma.hbm_to_vmem [thread:$0]  %s55, 256, %s57, [#allocation8], 64, 64, 4
    $region17: #{tpu_custom_call.1} parent=1 // pred_fallthru
      _
    // Predicated region
    $region18: #{tpu_custom_call.1} parent=1 // pred_check
      _
    $region19: #{tpu_custom_call.1} parent=1 // pred_check_branch
      %64 = sbr.rel (0) target = $region21
    $region20: #{tpu_custom_call.1} parent=1 // pred_region
      %66 = vsyncadd [#allocation11], 0
      %s67 = sshll.u32 %s4, 4
      %s68 = int_to_ptr.hbm [resolvable:$true] %s67
      %s69 = sshll.u32 [#allocation10], 4
      %s70 = int_to_ptr.vmem [resolvable:$true] %s69
      %75 = dma.hbm_to_vmem [thread:$0]  %s68, 256, %s70, [#allocation11], 64, 64, 4
    $region21: #{tpu_custom_call.1} parent=1 // pred_fallthru
      _
    // Predicated region
    $region22: #{tpu_custom_call.1} parent=1 // pred_check
      _
    $region23: #{tpu_custom_call.1} parent=1 // pred_check_branch
      %77 = sbr.rel (0) target = $region25
    $region24: #{tpu_custom_call.1} parent=1 // pred_region
      _
    $region25: #{tpu_custom_call.1} parent=1 // pred_fallthru
      _
    // Predicated region
    $region26: #{tpu_custom_call.1} parent=1 // pred_check
      _
    $region27: #{tpu_custom_call.1} parent=1 // pred_check_branch
      %79 = sbr.rel (0) target = $region29
    $region28: #{tpu_custom_call.1} parent=1 // pred_region
      %81 = vsyncadd [#allocation11], 0
      %s82 = sshll.u32 %s6, 4
      %s83 = int_to_ptr.hbm [resolvable:$true] %s82
      %s84 = sshll.u32 [#allocation12], 4
      %s85 = int_to_ptr.vmem [resolvable:$true] %s84
      %90 = dma.hbm_to_vmem [thread:$0]  %s83, 256, %s85, [#allocation11], 64, 64, 4
    $region29: #{tpu_custom_call.1} parent=1 // pred_fallthru
      _
    // Predicated region
    $region30: #{tpu_custom_call.1} parent=1 // pred_check
      _
    $region31: #{tpu_custom_call.1} parent=1 // pred_check_branch
      %92 = sbr.rel (0) target = $region33
    $region32: #{tpu_custom_call.1} parent=1 // pred_region
      %94 = vsyncadd [#allocation14], 0
      %s95 = sshll.u32 %s7, 4
      %s96 = int_to_ptr.hbm [resolvable:$true] %s95
      %s97 = sshll.u32 [#allocation13], 4
      %s98 = int_to_ptr.vmem [resolvable:$true] %s97
      %103 = dma.hbm_to_vmem [thread:$0]  %s96, 256, %s98, [#allocation14], 64, 64, 4
    $region33: #{tpu_custom_call.1} parent=1 // pred_fallthru
      _
    // Predicated region
    $region34: #{tpu_custom_call.1} parent=1 // pred_check
      _
    $region35: #{tpu_custom_call.1} parent=1 // pred_check_branch
      %105 = sbr.rel (0) target = $region37
    $region36: #{tpu_custom_call.1} parent=1 // pred_region
      _
    $region37: #{tpu_custom_call.1} parent=1 // pred_fallthru
      _
    // Predicated region
    $region38: #{tpu_custom_call.1} parent=1 // pred_check
      _
    $region39: #{tpu_custom_call.1} parent=1 // pred_check_branch
      %107 = sbr.rel (0) target = $region41
    $region40: #{tpu_custom_call.1} parent=1 // pred_region
      _
    $region41: #{tpu_custom_call.1} parent=1 // pred_fallthru
      _
    // Predicated region
    $region42: #{tpu_custom_call.1} parent=1 // pred_check
      _
    $region43: #{tpu_custom_call.1} parent=1 // pred_check_branch
      %109 = sbr.rel (0) target = $region45
    $region44: #{tpu_custom_call.1} parent=1 // pred_region
      _
    $region45: #{tpu_custom_call.1} parent=1 // pred_fallthru
      _
    // Predicated region
    $region46: #{tpu_custom_call.1} parent=1 // pred_check
      _
    $region47: #{tpu_custom_call.1} parent=1 // pred_check_branch
      %111 = sbr.rel (0) target = $region49
    $region48: #{tpu_custom_call.1} parent=1 // pred_region
      %113 = dma.done [#allocation6], 1024
    $region49: #{tpu_custom_call.1} parent=1 // pred_fallthru
      _
    // Predicated region
    $region50: #{tpu_custom_call.1} parent=1 // pred_check
      _
    $region51: #{tpu_custom_call.1} parent=1 // pred_check_branch
      %115 = sbr.rel (0) target = $region53
    $region52: #{tpu_custom_call.1} parent=1 // pred_region
      %117 = dma.done [#allocation8], 128
    $region53: #{tpu_custom_call.1} parent=1 // pred_fallthru
      _
    // Predicated region
    $region54: #{tpu_custom_call.1} parent=1 // pred_check
      _
    $region55: #{tpu_custom_call.1} parent=1 // pred_check_branch
      %119 = sbr.rel (0) target = $region57
    $region56: #{tpu_custom_call.1} parent=1 // pred_region
      %121 = dma.done [#allocation8], 256
    $region57: #{tpu_custom_call.1} parent=1 // pred_fallthru
      _
    // Predicated region
    $region58: #{tpu_custom_call.1} parent=1 // pred_check
      _
    $region59: #{tpu_custom_call.1} parent=1 // pred_check_branch
      %123 = sbr.rel (0) target = $region61
    $region60: #{tpu_custom_call.1} parent=1 // pred_region
      %125 = dma.done [#allocation11], 256
    $region61: #{tpu_custom_call.1} parent=1 // pred_fallthru
      _
    // Predicated region
    $region62: #{tpu_custom_call.1} parent=1 // pred_check
      _
    $region63: #{tpu_custom_call.1} parent=1 // pred_check_branch
      %127 = sbr.rel (0) target = $region65
    $region64: #{tpu_custom_call.1} parent=1 // pred_region
      %129 = dma.done [#allocation11], 256
    $region65: #{tpu_custom_call.1} parent=1 // pred_fallthru
      _
    // Predicated region
    $region66: #{tpu_custom_call.1} parent=1 // pred_check
      _
    $region67: #{tpu_custom_call.1} parent=1 // pred_check_branch
      %131 = sbr.rel (0) target = $region69
    $region68: #{tpu_custom_call.1} parent=1 // pred_region
      %133 = dma.done [#allocation14], 256
    $region69: #{tpu_custom_call.1} parent=1 // pred_fallthru
      _
    %v135 = vld [vmem:[#allocation5] sm:$0xff]
    %v136 = vld [vmem:[#allocation5 + $0x8] sm:$0xff]
    %v137 = vld [vmem:[#allocation5 + $0x10] sm:$0xff]
    %v138 = vld [vmem:[#allocation5 + $0x18] sm:$0xff]
    %v139 = vld [vmem:[#allocation5 + $0x20] sm:$0xff]
    %v140 = vld [vmem:[#allocation5 + $0x28] sm:$0xff]
    %v141 = vld [vmem:[#allocation5 + $0x30] sm:$0xff]
    %v142 = vld [vmem:[#allocation5 + $0x38] sm:$0xff]
    %v143 = vpack.c.bf16 %v136, %v135
    %v144 = vpack.c.bf16 %v138, %v137
    %v145 = vpack.c.bf16 %v140, %v139
    %v146 = vpack.c.bf16 %v142, %v141
    %v147 = vld [vmem:[#allocation7] sm:$0xf]
    %v148 = vld [vmem:[#allocation7 + $0x4] sm:$0xf]
    %v149 = vld [vmem:[%s2] sm:$0x1]
    %v151 = vperm.slane %v149, 0
    %v155 = vunpack.c.l.b16 %v147
    %v156 = vunpack.c.l.b16 %v148
    %v157 = vpack.c.b16 %v156, %v155
    %vm159 = vcmask 130048
    %v161 = vsel %vm159, %v143, 0
    %v164 = vsel %vm159, %v144, 0
    %v167 = vsel %vm159, %v145, 0
    %v170 = vsel %vm159, %v146, 0
    %172 = vmatpush.bf16.msra.mxu0 0
    %173 = vmatpush.bf16.msra.mxu0 0
    %174 = vmatpush.bf16.msra.mxu0 0
    %175 = vmatpush.bf16.msra.mxu0 0
    %176 = vmatpush.bf16.msra.mxu0 0
    %177 = vmatpush.bf16.msra.mxu0 0
    %178 = vmatpush.bf16.msra.mxu0 0
    %179 = vmatpush.bf16.msra.mxu0 %v157
    %180 = vmatmul.bf16.gmra.mxu0 %v161
    %v181 = vpop.f32.mrf.mxu0
    %v182 = vadd.f32 %v151, %v181
    %v183 = vpop.f32.mrf.mxu0
    %v184 = vadd.f32 %v151, %v183
    %185 = vmatmul.bf16.gmra.mxu0 %v164
    %v186 = vpop.f32.mrf.mxu0
    %v187 = vadd.f32 %v151, %v186
    %v188 = vpop.f32.mrf.mxu0
    %v189 = vadd.f32 %v151, %v188
    %190 = vmatmul.bf16.gmra.mxu0 %v167
    %v191 = vpop.f32.mrf.mxu0
    %v192 = vadd.f32 %v151, %v191
    %v193 = vpop.f32.mrf.mxu0
    %v194 = vadd.f32 %v151, %v193
    %195 = vmatmul.bf16.gmra.mxu0 %v170
    %v196 = vpop.f32.mrf.mxu0
    %v197 = vadd.f32 %v151, %v196
    %v198 = vpop.f32.mrf.mxu0
    %v199 = vadd.f32 %v151, %v198
    %200 = vdwg.mxu0
    %v201 = vmax.f32 %v182, 0.0
    %v202 = vmax.f32 %v184, 0.0
    %v203 = vmax.f32 %v187, 0.0
    %v204 = vmax.f32 %v189, 0.0
    %v205 = vmax.f32 %v192, 0.0
    %v206 = vmax.f32 %v194, 0.0
    %v207 = vmax.f32 %v197, 0.0
    %v208 = vmax.f32 %v199, 0.0
    %v209 = vpack.c.bf16 %v201, %v201
    %v210 = vpack.c.bf16 %v202, %v202
    %v211 = vpack.c.bf16 %v203, %v203
    %v212 = vpack.c.bf16 %v204, %v204
    %v213 = vpack.c.bf16 %v205, %v205
    %v214 = vpack.c.bf16 %v206, %v206
    %v215 = vpack.c.bf16 %v207, %v207
    %v216 = vpack.c.bf16 %v208, %v208
    %vm217 = vcmask 257024
    %218 = vst.msk [vmem:[#allocation2] sm:$0xf] %vm217, %v209
    %219 = vst.msk [vmem:[#allocation2 + $0x4] sm:$0xf] %vm217, %v210
    %220 = vst.msk [vmem:[#allocation2 + $0x8] sm:$0xf] %vm217, %v211
    %221 = vst.msk [vmem:[#allocation2 + $0xc] sm:$0xf] %vm217, %v212
    %222 = vst.msk [vmem:[#allocation2 + $0x10] sm:$0xf] %vm217, %v213
    %223 = vst.msk [vmem:[#allocation2 + $0x14] sm:$0xf] %vm217, %v214
    %224 = vst.msk [vmem:[#allocation2 + $0x18] sm:$0xf] %vm217, %v215
    %225 = vst.msk [vmem:[#allocation2 + $0x1c] sm:$0xf] %vm217, %v216
    %v226 = vld [vmem:[#allocation9] sm:$0xf]
    %v227 = vld [vmem:[#allocation9 + $0x4] sm:$0xf]
    %v228 = vld [vmem:[#allocation9 + $0x8] sm:$0xf]
    %v229 = vld [vmem:[#allocation9 + $0xc] sm:$0xf]
    %v230 = vld [vmem:[#allocation10] sm:$0xf]
    %v231 = vld [vmem:[#allocation10 + $0x4] sm:$0xf]
    %v232 = vld [vmem:[#allocation10 + $0x8] sm:$0xf]
    %v233 = vld [vmem:[#allocation10 + $0xc] sm:$0xf]
    %v234 = vld [vmem:[%s5] sm:$0x1]
    %v235 = vld [vmem:[#allocation2] sm:$0xf]
    %v236 = vld [vmem:[#allocation2 + $0x4] sm:$0xf]
    %v237 = vld [vmem:[#allocation2 + $0x8] sm:$0xf]
    %v238 = vld [vmem:[#allocation2 + $0xc] sm:$0xf]
    %v239 = vld [vmem:[#allocation2 + $0x10] sm:$0xf]
    %v240 = vld [vmem:[#allocation2 + $0x14] sm:$0xf]
    %v241 = vld [vmem:[#allocation2 + $0x18] sm:$0xf]
    %v242 = vld [vmem:[#allocation2 + $0x1c] sm:$0xf]
    %v244 = vperm.slane %v234, 0
    %v254 = vunpack.c.l.b16 %v235
    %v255 = vunpack.c.l.b16 %v236
    %v256 = vunpack.c.l.b16 %v237
    %v257 = vunpack.c.l.b16 %v238
    %v258 = vunpack.c.l.b16 %v239
    %v259 = vunpack.c.l.b16 %v240
    %v260 = vunpack.c.l.b16 %v241
    %v261 = vunpack.c.l.b16 %v242
    %v262 = vpack.c.b16 %v255, %v254
    %v263 = vpack.c.b16 %v257, %v256
    %v264 = vpack.c.b16 %v259, %v258
    %v265 = vpack.c.b16 %v261, %v260
    %v270 = vunpack.c.l.b16 %v226
    %v271 = vunpack.c.l.b16 %v227
    %v272 = vunpack.c.l.b16 %v228
    %v273 = vunpack.c.l.b16 %v229
    %v274 = vpack.c.b16 %v271, %v270
    %v275 = vpack.c.b16 %v273, %v272
    %vm278 = vcmask 261120
    %v280 = vsel %vm278, %v262, 0
    %v283 = vsel %vm278, %v263, 0
    %v286 = vsel %vm278, %v264, 0
    %v289 = vsel %vm278, %v265, 0
    %291 = vmatpush.bf16.msra.mxu0 0
    %292 = vmatpush.bf16.msra.mxu0 0
    %293 = vmatpush.bf16.msra.mxu0 0
    %294 = vmatpush.bf16.msra.mxu0 0
    %295 = vmatpush.bf16.msra.mxu0 0
    %296 = vmatpush.bf16.msra.mxu0 0
    %297 = vmatpush.bf16.msra.mxu0 %v275
    %298 = vmatpush.bf16.msra.mxu0 %v274
    %299 = vmatmul.bf16.gmra.mxu0 %v280
    %v300 = vpop.f32.mrf.mxu0
    %v301 = vadd.f32 %v244, %v300
    %v302 = vpop.f32.mrf.mxu0
    %v303 = vadd.f32 %v244, %v302
    %304 = vmatmul.bf16.gmra.mxu0 %v283
    %v305 = vpop.f32.mrf.mxu0
    %v306 = vadd.f32 %v244, %v305
    %v307 = vpop.f32.mrf.mxu0
    %v308 = vadd.f32 %v244, %v307
    %309 = vmatmul.bf16.gmra.mxu0 %v286
    %v310 = vpop.f32.mrf.mxu0
    %v311 = vadd.f32 %v244, %v310
    %v312 = vpop.f32.mrf.mxu0
    %v313 = vadd.f32 %v244, %v312
    %314 = vmatmul.bf16.gmra.mxu0 %v289
    %v315 = vpop.f32.mrf.mxu0
    %v316 = vadd.f32 %v244, %v315
    %v317 = vpop.f32.mrf.mxu0
    %v318 = vadd.f32 %v244, %v317
    %319 = vdwg.mxu0
    %v320 = vpack.c.bf16 %v301, %v301
    %v321 = vpack.c.bf16 %v303, %v303
    %v322 = vpack.c.bf16 %v306, %v306
    %v323 = vpack.c.bf16 %v308, %v308
    %v324 = vpack.c.bf16 %v311, %v311
    %v325 = vpack.c.bf16 %v313, %v313
    %v326 = vpack.c.bf16 %v316, %v316
    %v327 = vpack.c.bf16 %v318, %v318
    %328 = vst [vmem:[#allocation3] sm:$0xf] %v320
    %329 = vst [vmem:[#allocation3 + $0x4] sm:$0xf] %v321
    %330 = vst [vmem:[#allocation3 + $0x8] sm:$0xf] %v322
    %331 = vst [vmem:[#allocation3 + $0xc] sm:$0xf] %v323
    %332 = vst [vmem:[#allocation3 + $0x10] sm:$0xf] %v324
    %333 = vst [vmem:[#allocation3 + $0x14] sm:$0xf] %v325
    %334 = vst [vmem:[#allocation3 + $0x18] sm:$0xf] %v326
    %335 = vst [vmem:[#allocation3 + $0x1c] sm:$0xf] %v327
    %v336 = vld [vmem:[#allocation3] sm:$0xf]
    %v337 = vunpack.c.l.bf16 %v336
    %v342 = vunpack.c.l.b16 %v230
    %v343 = vunpack.c.l.b16 %v231
    %v344 = vunpack.c.l.b16 %v232
    %v345 = vunpack.c.l.b16 %v233
    %v346 = vpack.c.b16 %v343, %v342
    %v347 = vpack.c.b16 %v345, %v344
    %v351 = vsel %vm278, 0, 0
    %353 = vmatpush.bf16.msra.mxu0 0
    %354 = vmatpush.bf16.msra.mxu0 0
    %355 = vmatpush.bf16.msra.mxu0 0
    %356 = vmatpush.bf16.msra.mxu0 0
    %357 = vmatpush.bf16.msra.mxu0 0
    %358 = vmatpush.bf16.msra.mxu0 0
    %359 = vmatpush.bf16.msra.mxu0 %v347
    %360 = vmatpush.bf16.msra.mxu0 %v346
    %361 = vmatmul.bf16.gmra.mxu0 %v351
    %v362 = vpop.f32.mrf.mxu0
    %v363 = vadd.f32 %v337, %v362
    %v364 = vpop.f32.mrf.mxu0
    %365 = vdwg.mxu0
    %v366 = vtanh.pop %v363
    %v367 = vmul.f32 %v366, 0.5
    %v368 = vadd.f32 %v367, 0.5
    %v369 = vmul.f32 %v368, 0.0
    %371 = vrot.lane.b32.xlu0 %v366, 64
    %v372 = vpop.permute.xlu0 %371
    %v374 = vmul.f32 %v368, %v372
    %376 = vrot.lane.b32.xlu0 %v374, 32
    %v377 = vpop.permute.xlu0 %376
    %v379 = vadd.f32 %v369, %v377
    %v380 = vtanh.pop %v379
    %382 = vrot.lane.b32.xlu0 %v380, 64
    %v383 = vpop.permute.xlu0 %382
    %v385 = vmul.f32 %v368, %v383
    %v386 = vpack.c.bf16 %v385, %v385
    %388 = vrot.lane.b32.xlu0 %v386, 32
    %v389 = vpop.permute.xlu0 %388
    %391 = vst.msk [vmem:[#allocation2] sm:$0xf] %vm217, %v389
    %s392 = scalar_lea.vmem [#allocation3], 4
    %v393 = vld [vmem:[%s392] sm:$0xf]
    %v394 = vunpack.c.l.bf16 %v393
    %v395 = vunpack.c.l.b16 %v386
    %v396 = vpack.c.b16 %v395, %v395
    %397 = vrot.lane.b32.xlu0 %v396, 32
    %v398 = vpop.permute.xlu0 %397
    %v400 = vsel %vm278, %v398, 0
    %402 = vmatpush.bf16.msra.mxu0 0
    %403 = vmatpush.bf16.msra.mxu0 0
    %404 = vmatpush.bf16.msra.mxu0 0
    %405 = vmatpush.bf16.msra.mxu0 0
    %406 = vmatpush.bf16.msra.mxu0 0
    %407 = vmatpush.bf16.msra.mxu0 0
    %408 = vmatpush.bf16.msra.mxu0 %v347
    %409 = vmatpush.bf16.msra.mxu0 %v346
    %410 = vmatmul.bf16.gmra.mxu0 %v400
    %v411 = vpop.f32.mrf.mxu0
    %v412 = vadd.f32 %v394, %v411
    %v413 = vpop.f32.mrf.mxu0
    %414 = vdwg.mxu0
    %v415 = vtanh.pop %v412
    %v416 = vmul.f32 %v415, 0.5
    %v417 = vadd.f32 %v416, 0.5
    %v418 = vmul.f32 %v417, %v379
    %420 = vrot.lane.b32.xlu0 %v415, 64
    %v421 = vpop.permute.xlu0 %420
    %v423 = vmul.f32 %v417, %v421
    %425 = vrot.lane.b32.xlu0 %v423, 32
    %v426 = vpop.permute.xlu0 %425
    %v428 = vadd.f32 %v418, %v426
    %v429 = vtanh.pop %v428
    %431 = vrot.lane.b32.xlu0 %v429, 64
    %v432 = vpop.permute.xlu0 %431
    %v434 = vmul.f32 %v417, %v432
    %v435 = vpack.c.bf16 %v434, %v434
    %437 = vrot.lane.b32.xlu0 %v435, 32
    %v438 = vpop.permute.xlu0 %437
    %s440 = scalar_lea.vmem [#allocation2], 4
    %441 = vst.msk [vmem:[%s440] sm:$0xf] %vm217, %v438
    %s442 = scalar_lea.vmem [#allocation3], 8
    %v443 = vld [vmem:[%s442] sm:$0xf]
    %v444 = vunpack.c.l.bf16 %v443
    %v445 = vunpack.c.l.b16 %v435
    %v446 = vpack.c.b16 %v445, %v445
    %447 = vrot.lane.b32.xlu0 %v446, 32
    %v448 = vpop.permute.xlu0 %447
    %v450 = vsel %vm278, %v448, 0
    %452 = vmatpush.bf16.msra.mxu0 0
    %453 = vmatpush.bf16.msra.mxu0 0
    %454 = vmatpush.bf16.msra.mxu0 0
    %455 = vmatpush.bf16.msra.mxu0 0
    %456 = vmatpush.bf16.msra.mxu0 0
    %457 = vmatpush.bf16.msra.mxu0 0
    %458 = vmatpush.bf16.msra.mxu0 %v347
    %459 = vmatpush.bf16.msra.mxu0 %v346
    %460 = vmatmul.bf16.gmra.mxu0 %v450
    %v461 = vpop.f32.mrf.mxu0
    %v462 = vadd.f32 %v444, %v461
    %v463 = vpop.f32.mrf.mxu0
    %464 = vdwg.mxu0
    %v465 = vtanh.pop %v462
    %v466 = vmul.f32 %v465, 0.5
    %v467 = vadd.f32 %v466, 0.5
    %v468 = vmul.f32 %v467, %v428
    %470 = vrot.lane.b32.xlu0 %v465, 64
    %v471 = vpop.permute.xlu0 %470
    %v473 = vmul.f32 %v467, %v471
    %475 = vrot.lane.b32.xlu0 %v473, 32
    %v476 = vpop.permute.xlu0 %475
    %v478 = vadd.f32 %v468, %v476
    %v479 = vtanh.pop %v478
    %481 = vrot.lane.b32.xlu0 %v479, 64
    %v482 = vpop.permute.xlu0 %481
    %v484 = vmul.f32 %v467, %v482
    %v485 = vpack.c.bf16 %v484, %v484
    %487 = vrot.lane.b32.xlu0 %v485, 32
    %v488 = vpop.permute.xlu0 %487
    %s490 = scalar_lea.vmem [#allocation2], 8
    %491 = vst.msk [vmem:[%s490] sm:$0xf] %vm217, %v488
    %s492 = scalar_lea.vmem [#allocation3], 12
    %v493 = vld [vmem:[%s492] sm:$0xf]
    %v494 = vunpack.c.l.bf16 %v493
    %v495 = vunpack.c.l.b16 %v485
    %v496 = vpack.c.b16 %v495, %v495
    %497 = vrot.lane.b32.xlu0 %v496, 32
    %v498 = vpop.permute.xlu0 %497
    %v500 = vsel %vm278, %v498, 0
    %502 = vmatpush.bf16.msra.mxu0 0
    %503 = vmatpush.bf16.msra.mxu0 0
    %504 = vmatpush.bf16.msra.mxu0 0
    %505 = vmatpush.bf16.msra.mxu0 0
    %506 = vmatpush.bf16.msra.mxu0 0
    %507 = vmatpush.bf16.msra.mxu0 0
    %508 = vmatpush.bf16.msra.mxu0 %v347
    %509 = vmatpush.bf16.msra.mxu0 %v346
    %510 = vmatmul.bf16.gmra.mxu0 %v500
    %v511 = vpop.f32.mrf.mxu0
    %v512 = vadd.f32 %v494, %v511
    %v513 = vpop.f32.mrf.mxu0
    %514 = vdwg.mxu0
    %v515 = vtanh.pop %v512
    %v516 = vmul.f32 %v515, 0.5
    %v517 = vadd.f32 %v516, 0.5
    %v518 = vmul.f32 %v517, %v478
    %520 = vrot.lane.b32.xlu0 %v515, 64
    %v521 = vpop.permute.xlu0 %520
    %v523 = vmul.f32 %v517, %v521
    %525 = vrot.lane.b32.xlu0 %v523, 32
    %v526 = vpop.permute.xlu0 %525
    %v528 = vadd.f32 %v518, %v526
    %v529 = vtanh.pop %v528
    %531 = vrot.lane.b32.xlu0 %v529, 64
    %v532 = vpop.permute.xlu0 %531
    %v534 = vmul.f32 %v517, %v532
    %v535 = vpack.c.bf16 %v534, %v534
    %537 = vrot.lane.b32.xlu0 %v535, 32
    %v538 = vpop.permute.xlu0 %537
    %s540 = scalar_lea.vmem [#allocation2], 12
    %541 = vst.msk [vmem:[%s540] sm:$0xf] %vm217, %v538
    %s542 = scalar_lea.vmem [#allocation3], 16
    %v543 = vld [vmem:[%s542] sm:$0xf]
    %v544 = vunpack.c.l.bf16 %v543
    %v545 = vunpack.c.l.b16 %v535
    %v546 = vpack.c.b16 %v545, %v545
    %547 = vrot.lane.b32.xlu0 %v546, 32
    %v548 = vpop.permute.xlu0 %547
    %v550 = vsel %vm278, %v548, 0
    %552 = vmatpush.bf16.msra.mxu0 0
    %553 = vmatpush.bf16.msra.mxu0 0
    %554 = vmatpush.bf16.msra.mxu0 0
    %555 = vmatpush.bf16.msra.mxu0 0
    %556 = vmatpush.bf16.msra.mxu0 0
    %557 = vmatpush.bf16.msra.mxu0 0
    %558 = vmatpush.bf16.msra.mxu0 %v347
    %559 = vmatpush.bf16.msra.mxu0 %v346
    %560 = vmatmul.bf16.gmra.mxu0 %v550
    %v561 = vpop.f32.mrf.mxu0
    %v562 = vadd.f32 %v544, %v561
    %v563 = vpop.f32.mrf.mxu0
    %564 = vdwg.mxu0
    %v565 = vtanh.pop %v562
    %v566 = vmul.f32 %v565, 0.5
    %v567 = vadd.f32 %v566, 0.5
    %v568 = vmul.f32 %v567, %v528
    %570 = vrot.lane.b32.xlu0 %v565, 64
    %v571 = vpop.permute.xlu0 %570
    %v573 = vmul.f32 %v567, %v571
    %575 = vrot.lane.b32.xlu0 %v573, 32
    %v576 = vpop.permute.xlu0 %575
    %v578 = vadd.f32 %v568, %v576
    %v579 = vtanh.pop %v578
    %581 = vrot.lane.b32.xlu0 %v579, 64
    %v582 = vpop.permute.xlu0 %581
    %v584 = vmul.f32 %v567, %v582
    %v585 = vpack.c.bf16 %v584, %v584
    %587 = vrot.lane.b32.xlu0 %v585, 32
    %v588 = vpop.permute.xlu0 %587
    %s590 = scalar_lea.vmem [#allocation2], 16
    %591 = vst.msk [vmem:[%s590] sm:$0xf] %vm217, %v588
    %s592 = scalar_lea.vmem [#allocation3], 20
    %v593 = vld [vmem:[%s592] sm:$0xf]
    %v594 = vunpack.c.l.bf16 %v593
    %v595 = vunpack.c.l.b16 %v585
    %v596 = vpack.c.b16 %v595, %v595
    %597 = vrot.lane.b32.xlu0 %v596, 32
    %v598 = vpop.permute.xlu0 %597
    %v600 = vsel %vm278, %v598, 0
    %602 = vmatpush.bf16.msra.mxu0 0
    %603 = vmatpush.bf16.msra.mxu0 0
    %604 = vmatpush.bf16.msra.mxu0 0
    %605 = vmatpush.bf16.msra.mxu0 0
    %606 = vmatpush.bf16.msra.mxu0 0
    %607 = vmatpush.bf16.msra.mxu0 0
    %608 = vmatpush.bf16.msra.mxu0 %v347
    %609 = vmatpush.bf16.msra.mxu0 %v346
    %610 = vmatmul.bf16.gmra.mxu0 %v600
    %v611 = vpop.f32.mrf.mxu0
    %v612 = vadd.f32 %v594, %v611
    %v613 = vpop.f32.mrf.mxu0
    %614 = vdwg.mxu0
    %v615 = vtanh.pop %v612
    %v616 = vmul.f32 %v615, 0.5
    %v617 = vadd.f32 %v616, 0.5
    %v618 = vmul.f32 %v617, %v578
    %620 = vrot.lane.b32.xlu0 %v615, 64
    %v621 = vpop.permute.xlu0 %620
    %v623 = vmul.f32 %v617, %v621
    %625 = vrot.lane.b32.xlu0 %v623, 32
    %v626 = vpop.permute.xlu0 %625
    %v628 = vadd.f32 %v618, %v626
    %v629 = vtanh.pop %v628
    %631 = vrot.lane.b32.xlu0 %v629, 64
    %v632 = vpop.permute.xlu0 %631
    %v634 = vmul.f32 %v617, %v632
    %v635 = vpack.c.bf16 %v634, %v634
    %637 = vrot.lane.b32.xlu0 %v635, 32
    %v638 = vpop.permute.xlu0 %637
    %s640 = scalar_lea.vmem [#allocation2], 20
    %641 = vst.msk [vmem:[%s640] sm:$0xf] %vm217, %v638
    %s642 = scalar_lea.vmem [#allocation3], 24
    %v643 = vld [vmem:[%s642] sm:$0xf]
    %v644 = vunpack.c.l.bf16 %v643
    %v645 = vunpack.c.l.b16 %v635
    %v646 = vpack.c.b16 %v645, %v645
    %647 = vrot.lane.b32.xlu0 %v646, 32
    %v648 = vpop.permute.xlu0 %647
    %v650 = vsel %vm278, %v648, 0
    %652 = vmatpush.bf16.msra.mxu0 0
    %653 = vmatpush.bf16.msra.mxu0 0
    %654 = vmatpush.bf16.msra.mxu0 0
    %655 = vmatpush.bf16.msra.mxu0 0
    %656 = vmatpush.bf16.msra.mxu0 0
    %657 = vmatpush.bf16.msra.mxu0 0
    %658 = vmatpush.bf16.msra.mxu0 %v347
    %659 = vmatpush.bf16.msra.mxu0 %v346
    %660 = vmatmul.bf16.gmra.mxu0 %v650
    %v661 = vpop.f32.mrf.mxu0
    %v662 = vadd.f32 %v644, %v661
    %v663 = vpop.f32.mrf.mxu0
    %664 = vdwg.mxu0
    %v665 = vtanh.pop %v662
    %v666 = vmul.f32 %v665, 0.5
    %v667 = vadd.f32 %v666, 0.5
    %v668 = vmul.f32 %v667, %v628
    %670 = vrot.lane.b32.xlu0 %v665, 64
    %v671 = vpop.permute.xlu0 %670
    %v673 = vmul.f32 %v667, %v671
    %675 = vrot.lane.b32.xlu0 %v673, 32
    %v676 = vpop.permute.xlu0 %675
    %v678 = vadd.f32 %v668, %v676
    %v679 = vtanh.pop %v678
    %681 = vrot.lane.b32.xlu0 %v679, 64
    %v682 = vpop.permute.xlu0 %681
    %v684 = vmul.f32 %v667, %v682
    %v685 = vpack.c.bf16 %v684, %v684
    %687 = vrot.lane.b32.xlu0 %v685, 32
    %v688 = vpop.permute.xlu0 %687
    %s690 = scalar_lea.vmem [#allocation2], 24
    %691 = vst.msk [vmem:[%s690] sm:$0xf] %vm217, %v688
    %s692 = scalar_lea.vmem [#allocation3], 28
    %v693 = vld [vmem:[%s692] sm:$0xf]
    %v694 = vunpack.c.l.bf16 %v693
    %v695 = vunpack.c.l.b16 %v685
    %v696 = vpack.c.b16 %v695, %v695
    %697 = vrot.lane.b32.xlu0 %v696, 32
    %v698 = vpop.permute.xlu0 %697
    %v700 = vsel %vm278, %v698, 0
    %702 = vmatpush.bf16.msra.mxu0 0
    %703 = vmatpush.bf16.msra.mxu0 0
    %704 = vmatpush.bf16.msra.mxu0 0
    %705 = vmatpush.bf16.msra.mxu0 0
    %706 = vmatpush.bf16.msra.mxu0 0
    %707 = vmatpush.bf16.msra.mxu0 0
    %708 = vmatpush.bf16.msra.mxu0 %v347
    %709 = vmatpush.bf16.msra.mxu0 %v346
    %710 = vmatmul.bf16.gmra.mxu0 %v700
    %v711 = vpop.f32.mrf.mxu0
    %v712 = vadd.f32 %v694, %v711
    %v713 = vpop.f32.mrf.mxu0
    %714 = vdwg.mxu0
    %v715 = vtanh.pop %v712
    %v716 = vmul.f32 %v715, 0.5
    %v717 = vadd.f32 %v716, 0.5
    %v718 = vmul.f32 %v717, %v678
    %720 = vrot.lane.b32.xlu0 %v715, 64
    %v721 = vpop.permute.xlu0 %720
    %v723 = vmul.f32 %v717, %v721
    %725 = vrot.lane.b32.xlu0 %v723, 32
    %v726 = vpop.permute.xlu0 %725
    %v728 = vadd.f32 %v718, %v726
    %v729 = vtanh.pop %v728
    %731 = vrot.lane.b32.xlu0 %v729, 64
    %v732 = vpop.permute.xlu0 %731
    %v734 = vmul.f32 %v717, %v732
    %v735 = vpack.c.bf16 %v734, %v734
    %737 = vrot.lane.b32.xlu0 %v735, 32
    %v738 = vpop.permute.xlu0 %737
    %s740 = scalar_lea.vmem [#allocation2], 28
    %741 = vst.msk [vmem:[%s740] sm:$0xf] %vm217, %v738
    %v742 = vld [vmem:[#allocation12] sm:$0xf]
    %v743 = vld [vmem:[#allocation12 + $0x4] sm:$0xf]
    %v744 = vld [vmem:[#allocation12 + $0x8] sm:$0xf]
    %v745 = vld [vmem:[#allocation12 + $0xc] sm:$0xf]
    %v746 = vld [vmem:[#allocation13] sm:$0xf]
    %v747 = vld [vmem:[#allocation13 + $0x4] sm:$0xf]
    %v748 = vld [vmem:[#allocation13 + $0x8] sm:$0xf]
    %v749 = vld [vmem:[#allocation13 + $0xc] sm:$0xf]
    %v750 = vld [vmem:[%s8] sm:$0x1]
    %v751 = vld [vmem:[#allocation2] sm:$0xf]
    %v752 = vld [vmem:[#allocation2 + $0x4] sm:$0xf]
    %v753 = vld [vmem:[#allocation2 + $0x8] sm:$0xf]
    %v754 = vld [vmem:[#allocation2 + $0xc] sm:$0xf]
    %v755 = vld [vmem:[#allocation2 + $0x10] sm:$0xf]
    %v756 = vld [vmem:[#allocation2 + $0x14] sm:$0xf]
    %v757 = vld [vmem:[#allocation2 + $0x18] sm:$0xf]
    %v758 = vld [vmem:[#allocation2 + $0x1c] sm:$0xf]
    %v760 = vperm.slane %v750, 0
    %v770 = vunpack.c.l.b16 %v751
    %v771 = vunpack.c.l.b16 %v752
    %v772 = vunpack.c.l.b16 %v753
    %v773 = vunpack.c.l.b16 %v754
    %v774 = vunpack.c.l.b16 %v755
    %v775 = vunpack.c.l.b16 %v756
    %v776 = vunpack.c.l.b16 %v757
    %v777 = vunpack.c.l.b16 %v758
    %v778 = vpack.c.b16 %v771, %v770
    %v779 = vpack.c.b16 %v773, %v772
    %v780 = vpack.c.b16 %v775, %v774
    %v781 = vpack.c.b16 %v777, %v776
    %v786 = vunpack.c.l.b16 %v742
    %v787 = vunpack.c.l.b16 %v743
    %v788 = vunpack.c.l.b16 %v744
    %v789 = vunpack.c.l.b16 %v745
    %v790 = vpack.c.b16 %v787, %v786
    %v791 = vpack.c.b16 %v789, %v788
    %v795 = vsel %vm278, %v778, 0
    %v798 = vsel %vm278, %v779, 0
    %v801 = vsel %vm278, %v780, 0
    %v804 = vsel %vm278, %v781, 0
    %806 = vmatpush.bf16.msra.mxu0 0
    %807 = vmatpush.bf16.msra.mxu0 0
    %808 = vmatpush.bf16.msra.mxu0 0
    %809 = vmatpush.bf16.msra.mxu0 0
    %810 = vmatpush.bf16.msra.mxu0 0
    %811 = vmatpush.bf16.msra.mxu0 0
    %812 = vmatpush.bf16.msra.mxu0 %v791
    %813 = vmatpush.bf16.msra.mxu0 %v790
    %814 = vmatmul.bf16.gmra.mxu0 %v795
    %v815 = vpop.f32.mrf.mxu0
    %v816 = vadd.f32 %v760, %v815
    %v817 = vpop.f32.mrf.mxu0
    %v818 = vadd.f32 %v760, %v817
    %819 = vmatmul.bf16.gmra.mxu0 %v798
    %v820 = vpop.f32.mrf.mxu0
    %v821 = vadd.f32 %v760, %v820
    %v822 = vpop.f32.mrf.mxu0
    %v823 = vadd.f32 %v760, %v822
    %824 = vmatmul.bf16.gmra.mxu0 %v801
    %v825 = vpop.f32.mrf.mxu0
    %v826 = vadd.f32 %v760, %v825
    %v827 = vpop.f32.mrf.mxu0
    %v828 = vadd.f32 %v760, %v827
    %829 = vmatmul.bf16.gmra.mxu0 %v804
    %v830 = vpop.f32.mrf.mxu0
    %v831 = vadd.f32 %v760, %v830
    %v832 = vpop.f32.mrf.mxu0
    %v833 = vadd.f32 %v760, %v832
    %834 = vdwg.mxu0
    %v835 = vpack.c.bf16 %v816, %v816
    %v836 = vpack.c.bf16 %v818, %v818
    %v837 = vpack.c.bf16 %v821, %v821
    %v838 = vpack.c.bf16 %v823, %v823
    %v839 = vpack.c.bf16 %v826, %v826
    %v840 = vpack.c.bf16 %v828, %v828
    %v841 = vpack.c.bf16 %v831, %v831
    %v842 = vpack.c.bf16 %v833, %v833
    %843 = vst [vmem:[#allocation3] sm:$0xf] %v835
    %844 = vst [vmem:[#allocation3 + $0x4] sm:$0xf] %v836
    %845 = vst [vmem:[#allocation3 + $0x8] sm:$0xf] %v837
    %846 = vst [vmem:[#allocation3 + $0xc] sm:$0xf] %v838
    %847 = vst [vmem:[#allocation3 + $0x10] sm:$0xf] %v839
    %848 = vst [vmem:[#allocation3 + $0x14] sm:$0xf] %v840
    %849 = vst [vmem:[#allocation3 + $0x18] sm:$0xf] %v841
    %850 = vst [vmem:[#allocation3 + $0x1c] sm:$0xf] %v842
    %v851 = vld [vmem:[#allocation3] sm:$0xf]
    %v852 = vunpack.c.l.bf16 %v851
    %v857 = vunpack.c.l.b16 %v746
    %v858 = vunpack.c.l.b16 %v747
    %v859 = vunpack.c.l.b16 %v748
    %v860 = vunpack.c.l.b16 %v749
    %v861 = vpack.c.b16 %v858, %v857
    %v862 = vpack.c.b16 %v860, %v859
    %865 = vmatpush.bf16.msra.mxu0 0
    %866 = vmatpush.bf16.msra.mxu0 0
    %867 = vmatpush.bf16.msra.mxu0 0
    %868 = vmatpush.bf16.msra.mxu0 0
    %869 = vmatpush.bf16.msra.mxu0 0
    %870 = vmatpush.bf16.msra.mxu0 0
    %871 = vmatpush.bf16.msra.mxu0 %v862
    %872 = vmatpush.bf16.msra.mxu0 %v861
    %873 = vmatmul.bf16.gmra.mxu0 %v351
    %v874 = vpop.f32.mrf.mxu0
    %v875 = vadd.f32 %v852, %v874
    %v876 = vpop.f32.mrf.mxu0
    %877 = vdwg.mxu0
    %v878 = vtanh.pop %v875
    %v879 = vmul.f32 %v878, 0.5
    %v880 = vadd.f32 %v879, 0.5
    %v881 = vmul.f32 %v880, 0.0
    %883 = vrot.lane.b32.xlu0 %v878, 64
    %v884 = vpop.permute.xlu0 %883
    %v886 = vmul.f32 %v880, %v884
    %888 = vrot.lane.b32.xlu0 %v886, 32
    %v889 = vpop.permute.xlu0 %888
    %v891 = vadd.f32 %v881, %v889
    %v892 = vtanh.pop %v891
    %894 = vrot.lane.b32.xlu0 %v892, 64
    %v895 = vpop.permute.xlu0 %894
    %v897 = vmul.f32 %v880, %v895
    %v898 = vpack.c.bf16 %v897, %v897
    %v899 = vld [vmem:[%s392] sm:$0xf]
    %v900 = vunpack.c.l.bf16 %v899
    %902 = vrot.lane.b32.xlu0 %v898, 32
    %v903 = vpop.permute.xlu0 %902
    %v905 = vsel %vm278, %v903, 0
    %907 = vmatpush.bf16.msra.mxu0 0
    %908 = vmatpush.bf16.msra.mxu0 0
    %909 = vmatpush.bf16.msra.mxu0 0
    %910 = vmatpush.bf16.msra.mxu0 0
    %911 = vmatpush.bf16.msra.mxu0 0
    %912 = vmatpush.bf16.msra.mxu0 0
    %913 = vmatpush.bf16.msra.mxu0 %v862
    %914 = vmatpush.bf16.msra.mxu0 %v861
    %915 = vmatmul.bf16.gmra.mxu0 %v905
    %v916 = vpop.f32.mrf.mxu0
    %v917 = vadd.f32 %v900, %v916
    %v918 = vpop.f32.mrf.mxu0
    %919 = vdwg.mxu0
    %v920 = vtanh.pop %v917
    %v921 = vmul.f32 %v920, 0.5
    %v922 = vadd.f32 %v921, 0.5
    %v923 = vmul.f32 %v922, %v891
    %925 = vrot.lane.b32.xlu0 %v920, 64
    %v926 = vpop.permute.xlu0 %925
    %v928 = vmul.f32 %v922, %v926
    %930 = vrot.lane.b32.xlu0 %v928, 32
    %v931 = vpop.permute.xlu0 %930
    %v933 = vadd.f32 %v923, %v931
    %v934 = vtanh.pop %v933
    %936 = vrot.lane.b32.xlu0 %v934, 64
    %v937 = vpop.permute.xlu0 %936
    %v939 = vmul.f32 %v922, %v937
    %v940 = vpack.c.bf16 %v939, %v939
    %v941 = vld [vmem:[%s442] sm:$0xf]
    %v942 = vunpack.c.l.bf16 %v941
    %944 = vrot.lane.b32.xlu0 %v940, 32
    %v945 = vpop.permute.xlu0 %944
    %v947 = vsel %vm278, %v945, 0
    %949 = vmatpush.bf16.msra.mxu0 0
    %950 = vmatpush.bf16.msra.mxu0 0
    %951 = vmatpush.bf16.msra.mxu0 0
    %952 = vmatpush.bf16.msra.mxu0 0
    %953 = vmatpush.bf16.msra.mxu0 0
    %954 = vmatpush.bf16.msra.mxu0 0
    %955 = vmatpush.bf16.msra.mxu0 %v862
    %956 = vmatpush.bf16.msra.mxu0 %v861
    %957 = vmatmul.bf16.gmra.mxu0 %v947
    %v958 = vpop.f32.mrf.mxu0
    %v959 = vadd.f32 %v942, %v958
    %v960 = vpop.f32.mrf.mxu0
    %961 = vdwg.mxu0
    %v962 = vtanh.pop %v959
    %v963 = vmul.f32 %v962, 0.5
    %v964 = vadd.f32 %v963, 0.5
    %v965 = vmul.f32 %v964, %v933
    %967 = vrot.lane.b32.xlu0 %v962, 64
    %v968 = vpop.permute.xlu0 %967
    %v970 = vmul.f32 %v964, %v968
    %972 = vrot.lane.b32.xlu0 %v970, 32
    %v973 = vpop.permute.xlu0 %972
    %v975 = vadd.f32 %v965, %v973
    %v976 = vtanh.pop %v975
    %978 = vrot.lane.b32.xlu0 %v976, 64
    %v979 = vpop.permute.xlu0 %978
    %v981 = vmul.f32 %v964, %v979
    %v982 = vpack.c.bf16 %v981, %v981
    %v983 = vld [vmem:[%s492] sm:$0xf]
    %v984 = vunpack.c.l.bf16 %v983
    %986 = vrot.lane.b32.xlu0 %v982, 32
    %v987 = vpop.permute.xlu0 %986
    %v989 = vsel %vm278, %v987, 0
    %991 = vmatpush.bf16.msra.mxu0 0
    %992 = vmatpush.bf16.msra.mxu0 0
    %993 = vmatpush.bf16.msra.mxu0 0
    %994 = vmatpush.bf16.msra.mxu0 0
    %995 = vmatpush.bf16.msra.mxu0 0
    %996 = vmatpush.bf16.msra.mxu0 0
    %997 = vmatpush.bf16.msra.mxu0 %v862
    %998 = vmatpush.bf16.msra.mxu0 %v861
    %999 = vmatmul.bf16.gmra.mxu0 %v989
    %v1000 = vpop.f32.mrf.mxu0
    %v1001 = vadd.f32 %v984, %v1000
    %v1002 = vpop.f32.mrf.mxu0
    %1003 = vdwg.mxu0
    %v1004 = vtanh.pop %v1001
    %v1005 = vmul.f32 %v1004, 0.5
    %v1006 = vadd.f32 %v1005, 0.5
    %v1007 = vmul.f32 %v1006, %v975
    %1009 = vrot.lane.b32.xlu0 %v1004, 64
    %v1010 = vpop.permute.xlu0 %1009
    %v1012 = vmul.f32 %v1006, %v1010
    %1014 = vrot.lane.b32.xlu0 %v1012, 32
    %v1015 = vpop.permute.xlu0 %1014
    %v1017 = vadd.f32 %v1007, %v1015
    %v1018 = vtanh.pop %v1017
    %1020 = vrot.lane.b32.xlu0 %v1018, 64
    %v1021 = vpop.permute.xlu0 %1020
    %v1023 = vmul.f32 %v1006, %v1021
    %v1024 = vpack.c.bf16 %v1023, %v1023
    %v1025 = vld [vmem:[%s542] sm:$0xf]
    %v1026 = vunpack.c.l.bf16 %v1025
    %1028 = vrot.lane.b32.xlu0 %v1024, 32
    %v1029 = vpop.permute.xlu0 %1028
    %v1031 = vsel %vm278, %v1029, 0
    %1033 = vmatpush.bf16.msra.mxu0 0
    %1034 = vmatpush.bf16.msra.mxu0 0
    %1035 = vmatpush.bf16.msra.mxu0 0
    %1036 = vmatpush.bf16.msra.mxu0 0
    %1037 = vmatpush.bf16.msra.mxu0 0
    %1038 = vmatpush.bf16.msra.mxu0 0
    %1039 = vmatpush.bf16.msra.mxu0 %v862
    %1040 = vmatpush.bf16.msra.mxu0 %v861
    %1041 = vmatmul.bf16.gmra.mxu0 %v1031
    %v1042 = vpop.f32.mrf.mxu0
    %v1043 = vadd.f32 %v1026, %v1042
    %v1044 = vpop.f32.mrf.mxu0
    %1045 = vdwg.mxu0
    %v1046 = vtanh.pop %v1043
    %v1047 = vmul.f32 %v1046, 0.5
    %v1048 = vadd.f32 %v1047, 0.5
    %v1049 = vmul.f32 %v1048, %v1017
    %1051 = vrot.lane.b32.xlu0 %v1046, 64
    %v1052 = vpop.permute.xlu0 %1051
    %v1054 = vmul.f32 %v1048, %v1052
    %1056 = vrot.lane.b32.xlu0 %v1054, 32
    %v1057 = vpop.permute.xlu0 %1056
    %v1059 = vadd.f32 %v1049, %v1057
    %v1060 = vtanh.pop %v1059
    %1062 = vrot.lane.b32.xlu0 %v1060, 64
    %v1063 = vpop.permute.xlu0 %1062
    %v1065 = vmul.f32 %v1048, %v1063
    %v1066 = vpack.c.bf16 %v1065, %v1065
    %v1067 = vld [vmem:[%s592] sm:$0xf]
    %v1068 = vunpack.c.l.bf16 %v1067
    %1070 = vrot.lane.b32.xlu0 %v1066, 32
    %v1071 = vpop.permute.xlu0 %1070
    %v1073 = vsel %vm278, %v1071, 0
    %1075 = vmatpush.bf16.msra.mxu0 0
    %1076 = vmatpush.bf16.msra.mxu0 0
    %1077 = vmatpush.bf16.msra.mxu0 0
    %1078 = vmatpush.bf16.msra.mxu0 0
    %1079 = vmatpush.bf16.msra.mxu0 0
    %1080 = vmatpush.bf16.msra.mxu0 0
    %1081 = vmatpush.bf16.msra.mxu0 %v862
    %1082 = vmatpush.bf16.msra.mxu0 %v861
    %1083 = vmatmul.bf16.gmra.mxu0 %v1073
    %v1084 = vpop.f32.mrf.mxu0
    %v1085 = vadd.f32 %v1068, %v1084
    %v1086 = vpop.f32.mrf.mxu0
    %1087 = vdwg.mxu0
    %v1088 = vtanh.pop %v1085
    %v1089 = vmul.f32 %v1088, 0.5
    %v1090 = vadd.f32 %v1089, 0.5
    %v1091 = vmul.f32 %v1090, %v1059
    %1093 = vrot.lane.b32.xlu0 %v1088, 64
    %v1094 = vpop.permute.xlu0 %1093
    %v1096 = vmul.f32 %v1090, %v1094
    %1098 = vrot.lane.b32.xlu0 %v1096, 32
    %v1099 = vpop.permute.xlu0 %1098
    %v1101 = vadd.f32 %v1091, %v1099
    %v1102 = vtanh.pop %v1101
    %1104 = vrot.lane.b32.xlu0 %v1102, 64
    %v1105 = vpop.permute.xlu0 %1104
    %v1107 = vmul.f32 %v1090, %v1105
    %v1108 = vpack.c.bf16 %v1107, %v1107
    %v1109 = vld [vmem:[%s642] sm:$0xf]
    %v1110 = vunpack.c.l.bf16 %v1109
    %1112 = vrot.lane.b32.xlu0 %v1108, 32
    %v1113 = vpop.permute.xlu0 %1112
    %v1115 = vsel %vm278, %v1113, 0
    %1117 = vmatpush.bf16.msra.mxu0 0
    %1118 = vmatpush.bf16.msra.mxu0 0
    %1119 = vmatpush.bf16.msra.mxu0 0
    %1120 = vmatpush.bf16.msra.mxu0 0
    %1121 = vmatpush.bf16.msra.mxu0 0
    %1122 = vmatpush.bf16.msra.mxu0 0
    %1123 = vmatpush.bf16.msra.mxu0 %v862
    %1124 = vmatpush.bf16.msra.mxu0 %v861
    %1125 = vmatmul.bf16.gmra.mxu0 %v1115
    %v1126 = vpop.f32.mrf.mxu0
    %v1127 = vadd.f32 %v1110, %v1126
    %v1128 = vpop.f32.mrf.mxu0
    %1129 = vdwg.mxu0
    %v1130 = vtanh.pop %v1127
    %v1131 = vmul.f32 %v1130, 0.5
    %v1132 = vadd.f32 %v1131, 0.5
    %v1133 = vmul.f32 %v1132, %v1101
    %1135 = vrot.lane.b32.xlu0 %v1130, 64
    %v1136 = vpop.permute.xlu0 %1135
    %v1138 = vmul.f32 %v1132, %v1136
    %1140 = vrot.lane.b32.xlu0 %v1138, 32
    %v1141 = vpop.permute.xlu0 %1140
    %v1143 = vadd.f32 %v1133, %v1141
    %v1144 = vtanh.pop %v1143
    %1146 = vrot.lane.b32.xlu0 %v1144, 64
    %v1147 = vpop.permute.xlu0 %1146
    %v1149 = vmul.f32 %v1132, %v1147
    %v1150 = vpack.c.bf16 %v1149, %v1149
    %v1151 = vld [vmem:[%s692] sm:$0xf]
    %v1152 = vunpack.c.l.bf16 %v1151
    %1154 = vrot.lane.b32.xlu0 %v1150, 32
    %v1155 = vpop.permute.xlu0 %1154
    %v1157 = vsel %vm278, %v1155, 0
    %1159 = vmatpush.bf16.msra.mxu0 0
    %1160 = vmatpush.bf16.msra.mxu0 0
    %1161 = vmatpush.bf16.msra.mxu0 0
    %1162 = vmatpush.bf16.msra.mxu0 0
    %1163 = vmatpush.bf16.msra.mxu0 0
    %1164 = vmatpush.bf16.msra.mxu0 0
    %1165 = vmatpush.bf16.msra.mxu0 %v862
    %1166 = vmatpush.bf16.msra.mxu0 %v861
    %1167 = vmatmul.bf16.gmra.mxu0 %v1157
    %v1168 = vpop.f32.mrf.mxu0
    %v1169 = vadd.f32 %v1152, %v1168
    %v1170 = vpop.f32.mrf.mxu0
    %1171 = vdwg.mxu0
    %v1172 = vtanh.pop %v1169
    %v1173 = vmul.f32 %v1172, 0.5
    %v1174 = vadd.f32 %v1173, 0.5
    %v1175 = vmul.f32 %v1174, %v1143
    %1177 = vrot.lane.b32.xlu0 %v1172, 64
    %v1178 = vpop.permute.xlu0 %1177
    %v1180 = vmul.f32 %v1174, %v1178
    %1182 = vrot.lane.b32.xlu0 %v1180, 32
    %v1183 = vpop.permute.xlu0 %1182
    %v1185 = vadd.f32 %v1175, %v1183
    %v1186 = vtanh.pop %v1185
    %1188 = vrot.lane.b32.xlu0 %v1186, 64
    %v1189 = vpop.permute.xlu0 %1188
    %v1191 = vmul.f32 %v1174, %v1189
    %v1192 = vld [vmem:[%s9] sm:$0x1]
    %v1194 = vperm.slane %v1192, 0
    %1195 = vrot.lane.b32.xlu0 %v1194, 96
    %v1196 = vpop.permute.xlu0 %1195
    %v1198 = vmul.f32 %v1191, %v1196
    %1200 = vrot.lane.b32.xlu0 %v1198, 32
    %v1201 = vpop.permute.xlu0 %1200
    %v1203 = vsel %vm278, %v1201, 0.0
    %1204 = vadd.xlane.f32.xlu0 %v1203
    %v1205 = vpop.xlane.xlu0 %1204
    %v1206 = vld [vmem:[#allocation4] sm:$0x1]
    %v1208 = vperm.slane %v1206, 0
    %v1210 = vadd.f32 %v1205, %v1208
    %v1211 = vmax.f32 %v1210, 0.0
    %vm1212 = vcmask 7168
    %1213 = vst.msk [vmem:[%s11] sm:$0xff] %vm1212, %v1211
    // Predicated region
    $region70: #{tpu_custom_call.1} parent=1 // pred_check
      _
    $region71: #{tpu_custom_call.1} parent=1 // pred_check_branch
      %1215 = sbr.rel (0) target = $region73
    $region72: #{tpu_custom_call.1} parent=1 // pred_region
      _
    $region73: #{tpu_custom_call.1} parent=1 // pred_fallthru
      _
    // Predicated region
    $region74: #{tpu_custom_call.1} parent=1 // pred_check
      _
    $region75: #{tpu_custom_call.1} parent=1 // pred_check_branch
      %1217 = sbr.rel (0) target = $region77
    $region76: #{tpu_custom_call.1} parent=1 // pred_region
      _
    $region77: #{tpu_custom_call.1} parent=1 // pred_fallthru
      _
    %1218 = vsyncpa [#allocation6], 1
    %1219 = vsyncpa [#allocation8], 1
    %1220 = vsyncpa [#allocation11], 1
    %1221 = vsyncpa [#allocation14], 1

</llo_original>
